<compile_context>
chip_gen: v6e
topology: v6e:2x2x1
jax: 0.10.0
libtpu: 0.0.40
codegen_flags: <defaults>
</compile_context>

<pallas_src>
import jax
import jax.numpy as jnp
from jax.experimental import pallas as pl
from jax.experimental.pallas import tpu as pltpu

_SUBLANE = 8
_LANE = 128
_MAX_ROW_TILE = 512


def _round_up(x, m):
    return ((x + m - 1) // m) * m


# ----------------------------------------------------------------------------
# Fused kernel: all layers of enc / task / adv chained in VMEM.
# Grid = (num_row_tiles,); each step processes one row tile end-to-end.
# ----------------------------------------------------------------------------
def _make_fused_kernel(n_enc, n_task, n_adv):
    n_layers = n_enc + n_task + n_adv

    def kernel(*refs):
        x_ref = refs[0]
        wb_refs = refs[1:1 + 2 * n_layers]        # interleaved (w, b) per layer
        out_refs = refs[1 + 2 * n_layers:]        # one output per layer

        def linear(h_f32, layer_idx, relu):
            w_ref = wb_refs[2 * layer_idx]
            b_ref = wb_refs[2 * layer_idx + 1]
            # bf16 x bf16 -> f32 on the MXU; epilogue in f32 on the VPU.
            y = jnp.dot(h_f32.astype(w_ref.dtype), w_ref[...],
                        preferred_element_type=jnp.float32)
            y = y + b_ref[...]                    # [1, Dout] f32 bias broadcast
            if relu:
                y = jnp.maximum(y, 0.0)
            return y

        li = 0
        # ---- encoder (is_classifier=False -> ReLU on every layer) ----------
        h = x_ref[...].astype(jnp.float32)
        for _ in range(n_enc):
            h = linear(h, li, relu=True)
            out_refs[li][...] = h.astype(out_refs[li].dtype)
            li += 1
        h_enc_last = h

        # ---- task head (is_classifier=True -> no ReLU on final layer) ------
        t = h_enc_last
        for i in range(n_task):
            t = linear(t, li, relu=(i < n_task - 1))
            out_refs[li][...] = t.astype(out_refs[li].dtype)
            li += 1

        # ---- adv head (wrapper extracts the fake half of the rows) ---------
        a = h_enc_last
        for i in range(n_adv):
            a = linear(a, li, relu=(i < n_adv - 1))
            out_refs[li][...] = a.astype(out_refs[li].dtype)
            li += 1

    return kernel


# ----------------------------------------------------------------------------
# MLP_REG_FPAD forward (single pallas_call).
# ----------------------------------------------------------------------------
def mlp_reg_fpad_forward(params, x_real, x_fake):
    enc = list(params["enc"])
    task = list(params["task"])
    adv = list(params["adv"])
    n_enc, n_task, n_adv = len(enc), len(task), len(adv)
    true_douts = [w.shape[1] for w, _ in enc + task + adv]

    B = x_real.shape[0]
    x_cat = jnp.concatenate([x_real, x_fake], axis=0)        # [2B, Din]
    M = x_cat.shape[0]

    # Row tiling: sublane-align, then round the padded batch up to a whole
    # number of row tiles (zero rows are a mathematical no-op and discarded).
    M_sub = _round_up(M, _SUBLANE)
    tile_m = min(M_sub, _MAX_ROW_TILE)
    M_pad = _round_up(M_sub, tile_m)
    if M_pad != M:
        x_cat = jnp.pad(x_cat, ((0, M_pad - M), (0, 0)))
    num_tiles = M_pad // tile_m

    # Lane-align the input feature dim (zero K-padding is a no-op).
    Din = x_cat.shape[1]
    Din_pad = _round_up(Din, _LANE)
    if Din_pad != Din:
        x_cat = jnp.pad(x_cat, ((0, 0), (0, Din_pad - Din)))
        w0, b0 = enc[0]
        enc[0] = (jnp.pad(w0, ((0, Din_pad - Din), (0, 0))), b0)

    def pad_head_output(stack):
        # Zero-pad the final layer's output dim so the logits tile is
        # lane-dense; the wrapper slices the true logits back out.
        out = list(stack)
        w, b = out[-1]
        d_out = w.shape[1]
        d_pad = _round_up(max(d_out, _LANE), _LANE)
        if d_pad != d_out:
            w = jnp.pad(w, ((0, 0), (0, d_pad - d_out)))
            b = jnp.pad(b, (0, d_pad - d_out))
            out[-1] = (w, b)
        return out

    stacks = list(enc) + pad_head_output(task) + pad_head_output(adv)

    kernel = _make_fused_kernel(n_enc, n_task, n_adv)

    inputs = [x_cat]
    in_specs = [pl.BlockSpec((tile_m, x_cat.shape[1]), lambda i: (i, 0))]
    out_shapes, out_specs = [], []
    for w, b in stacks:
        b2 = b.astype(jnp.float32).reshape(1, -1)
        inputs.append(w)
        inputs.append(b2)
        in_specs.append(pl.BlockSpec(w.shape, lambda i: (0, 0)))
        in_specs.append(pl.BlockSpec(b2.shape, lambda i: (0, 0)))
        d_out = w.shape[1]
        out_shapes.append(jax.ShapeDtypeStruct((M_pad, d_out), jnp.float32))
        out_specs.append(pl.BlockSpec((tile_m, d_out), lambda i: (i, 0)))

    outs = pl.pallas_call(
        kernel,
        grid=(num_tiles,),
        out_shape=tuple(out_shapes),
        in_specs=in_specs,
        out_specs=tuple(out_specs),
        compiler_params=pltpu.CompilerParams(
            dimension_semantics=("parallel",)),
    )(*inputs)

    enc_outs = outs[:n_enc]
    task_outs = outs[n_enc:n_enc + n_task]
    adv_outs = outs[n_enc + n_task:]
    enc_d = true_douts[:n_enc]
    task_d = true_douts[n_enc:n_enc + n_task]
    adv_d = true_douts[n_enc + n_task:]

    # Strip row / lane padding; adv head keeps only the fake half (rows B:2B).
    h_enc = [o[:M, :d] for o, d in zip(enc_outs, enc_d)]
    h_task = [o[:M, :d] for o, d in zip(task_outs, task_d)]
    h_adv = [o[B:M, :d] for o, d in zip(adv_outs, adv_d)]
    return h_enc, h_task, h_adv


# ----------------------------------------------------------------------------
# Deterministic parameter initialization (bf16 weights, f32 biases).
# ----------------------------------------------------------------------------
def init_mlp_params(key, input_dims, dense_dims):
    layers = []
    d_in = input_dims
    for d_out in dense_dims:
        key, kw, kb = jax.random.split(key, 3)
        w = jax.random.normal(kw, (d_in, d_out), jnp.float32) * 0.02
        b = jax.random.normal(kb, (d_out,), jnp.float32) * 0.01
        layers.append((w.astype(jnp.bfloat16), b))   # bf16 weights for the MXU
        d_in = d_out
    return key, layers


def init_params(key, num_materials, input_dims, dense_enc, dense_task):
    dense_adv = [128, 128, num_materials]
    key, enc = init_mlp_params(key, input_dims, dense_enc)
    key, task = init_mlp_params(key, dense_enc[-1], dense_task)
    key, adv = init_mlp_params(key, dense_enc[-1], dense_adv)
    return {"enc": enc, "task": task, "adv": adv}


if __name__ == "__main__":
    num_materials = 5
    input_dims = 275
    dense_enc = [128, 128]
    dense_task = [128, 128, 2]
    B = 4  # batch per branch (real / fake)

    key = jax.random.PRNGKey(0)
    key, kx1, kx2 = jax.random.split(key, 3)
    x_real = jax.random.normal(kx1, (B, input_dims), jnp.float32)
    x_fake = jax.random.normal(kx2, (B, input_dims), jnp.float32)

    params = init_params(key, num_materials, input_dims, dense_enc, dense_task)

    fwd = jax.jit(mlp_reg_fpad_forward)
    h_enc, h_task, h_adv = fwd(params, x_real, x_fake)
    jax.block_until_ready((h_enc, h_task, h_adv))

    # Shape sanity checks mirroring the PyTorch module's outputs.
    assert [t.shape for t in h_enc] == [(2 * B, 128), (2 * B, 128)]
    assert [t.shape for t in h_task] == [(2 * B, 128), (2 * B, 128), (2 * B, 2)]
    assert [t.shape for t in h_adv] == [(B, 128), (B, 128), (B, num_materials)]

    print("KERNEL_OK")
</pallas_src>

<mosaic_0001>
module attributes {stable_mosaic.version = 11 : i64} {
  func.func @kernel(%arg0: i32, %arg1: memref<8x384xf32, #tpu.memory_space<vmem>>, %arg2: memref<384x128xbf16, #tpu.memory_space<vmem>>, %arg3: memref<1x128xf32, #tpu.memory_space<vmem>>, %arg4: memref<128x128xbf16, #tpu.memory_space<vmem>>, %arg5: memref<1x128xf32, #tpu.memory_space<vmem>>, %arg6: memref<128x128xbf16, #tpu.memory_space<vmem>>, %arg7: memref<1x128xf32, #tpu.memory_space<vmem>>, %arg8: memref<128x128xbf16, #tpu.memory_space<vmem>>, %arg9: memref<1x128xf32, #tpu.memory_space<vmem>>, %arg10: memref<128x128xbf16, #tpu.memory_space<vmem>>, %arg11: memref<1x128xf32, #tpu.memory_space<vmem>>, %arg12: memref<128x128xbf16, #tpu.memory_space<vmem>>, %arg13: memref<1x128xf32, #tpu.memory_space<vmem>>, %arg14: memref<128x128xbf16, #tpu.memory_space<vmem>>, %arg15: memref<1x128xf32, #tpu.memory_space<vmem>>, %arg16: memref<128x128xbf16, #tpu.memory_space<vmem>>, %arg17: memref<1x128xf32, #tpu.memory_space<vmem>>, %arg18: memref<8x128xf32, #tpu.memory_space<vmem>>, %arg19: memref<8x128xf32, #tpu.memory_space<vmem>>, %arg20: memref<8x128xf32, #tpu.memory_space<vmem>>, %arg21: memref<8x128xf32, #tpu.memory_space<vmem>>, %arg22: memref<8x128xf32, #tpu.memory_space<vmem>>, %arg23: memref<8x128xf32, #tpu.memory_space<vmem>>, %arg24: memref<8x128xf32, #tpu.memory_space<vmem>>, %arg25: memref<8x128xf32, #tpu.memory_space<vmem>>) attributes {dimension_semantics = [#tpu.dimension_semantics<parallel>], iteration_bounds = array<i64: 1>, scalar_prefetch = 0 : i64, scratch_operands = 0 : i64, tpu.core_type = #tpu.core_type<tc>, window_params = [{transform_indices = @transform_0, window_bounds = array<i64: 8, 384>}, {pipeline_mode = #tpu.pipeline_mode<synchronous>, transform_indices = @transform_1, window_bounds = array<i64: 384, 128>}, {pipeline_mode = #tpu.pipeline_mode<synchronous>, transform_indices = @transform_2, window_bounds = array<i64: 1, 128>}, {pipeline_mode = #tpu.pipeline_mode<synchronous>, transform_indices = @transform_3, window_bounds = array<i64: 128, 128>}, {pipeline_mode = #tpu.pipeline_mode<synchronous>, transform_indices = @transform_4, window_bounds = array<i64: 1, 128>}, {pipeline_mode = #tpu.pipeline_mode<synchronous>, transform_indices = @transform_5, window_bounds = array<i64: 128, 128>}, {pipeline_mode = #tpu.pipeline_mode<synchronous>, transform_indices = @transform_6, window_bounds = array<i64: 1, 128>}, {pipeline_mode = #tpu.pipeline_mode<synchronous>, transform_indices = @transform_7, window_bounds = array<i64: 128, 128>}, {pipeline_mode = #tpu.pipeline_mode<synchronous>, transform_indices = @transform_8, window_bounds = array<i64: 1, 128>}, {pipeline_mode = #tpu.pipeline_mode<synchronous>, transform_indices = @transform_9, window_bounds = array<i64: 128, 128>}, {pipeline_mode = #tpu.pipeline_mode<synchronous>, transform_indices = @transform_10, window_bounds = array<i64: 1, 128>}, {pipeline_mode = #tpu.pipeline_mode<synchronous>, transform_indices = @transform_11, window_bounds = array<i64: 128, 128>}, {pipeline_mode = #tpu.pipeline_mode<synchronous>, transform_indices = @transform_12, window_bounds = array<i64: 1, 128>}, {pipeline_mode = #tpu.pipeline_mode<synchronous>, transform_indices = @transform_13, window_bounds = array<i64: 128, 128>}, {pipeline_mode = #tpu.pipeline_mode<synchronous>, transform_indices = @transform_14, window_bounds = array<i64: 1, 128>}, {pipeline_mode = #tpu.pipeline_mode<synchronous>, transform_indices = @transform_15, window_bounds = array<i64: 128, 128>}, {pipeline_mode = #tpu.pipeline_mode<synchronous>, transform_indices = @transform_16, window_bounds = array<i64: 1, 128>}, {transform_indices = @transform_17, window_bounds = array<i64: 8, 128>}, {transform_indices = @transform_18, window_bounds = array<i64: 8, 128>}, {transform_indices = @transform_19, window_bounds = array<i64: 8, 128>}, {transform_indices = @transform_20, window_bounds = array<i64: 8, 128>}, {transform_indices = @transform_21, window_bounds = array<i64: 8, 128>}, {transform_indices = @transform_22, window_bounds = array<i64: 8, 128>}, {transform_indices = @transform_23, window_bounds = array<i64: 8, 128>}, {transform_indices = @transform_24, window_bounds = array<i64: 8, 128>}]} {
    %c0 = arith.constant 0 : index
    %c0_0 = arith.constant 0 : index
    %0 = vector.load %arg1[%c0, %c0_0] : memref<8x384xf32, #tpu.memory_space<vmem>>, vector<8x384xf32>
    %1 = arith.truncf %0 : vector<8x384xf32> to vector<8x384xbf16>
    %c0_1 = arith.constant 0 : index
    %c0_2 = arith.constant 0 : index
    %2 = vector.load %arg2[%c0_1, %c0_2] : memref<384x128xbf16, #tpu.memory_space<vmem>>, vector<384x128xbf16>
    %cst = arith.constant dense<0.000000e+00> : vector<8x128xf32>
    %3 = tpu.matmul %1, %2, %cst {dimension_numbers = #tpu.dot_dimension_numbers<[1], [0], [0], [1], [0, 0, 1, 1], [], []>} : vector<8x384xbf16>, vector<384x128xbf16>, vector<8x128xf32> -> vector<8x128xf32>
    %c0_3 = arith.constant 0 : index
    %c0_4 = arith.constant 0 : index
    %4 = vector.load %arg3[%c0_3, %c0_4] : memref<1x128xf32, #tpu.memory_space<vmem>>, vector<1x128xf32>
    %5 = vector.broadcast %4 : vector<1x128xf32> to vector<8x128xf32>
    %6 = arith.addf %3, %5 : vector<8x128xf32>
    %cst_5 = arith.constant 0.000000e+00 : f32
    %7 = vector.broadcast %cst_5 : f32 to vector<8x128xf32>
    %8 = arith.maximumf %6, %7 : vector<8x128xf32>
    %c0_6 = arith.constant 0 : index
    %c0_7 = arith.constant 0 : index
    %9 = vector.load %arg18[%c0_6, %c0_7] : memref<8x128xf32, #tpu.memory_space<vmem>>, vector<8x128xf32>
    tpu.vector_store %arg18[%c0_6, %c0_7], %8 {strides = array<i32>} : memref<8x128xf32, #tpu.memory_space<vmem>>, vector<8x128xf32>,
    %10 = arith.truncf %8 : vector<8x128xf32> to vector<8x128xbf16>
    %c0_8 = arith.constant 0 : index
    %c0_9 = arith.constant 0 : index
    %11 = vector.load %arg4[%c0_8, %c0_9] : memref<128x128xbf16, #tpu.memory_space<vmem>>, vector<128x128xbf16>
    %cst_10 = arith.constant dense<0.000000e+00> : vector<8x128xf32>
    %12 = tpu.matmul %10, %11, %cst_10 {dimension_numbers = #tpu.dot_dimension_numbers<[1], [0], [0], [1], [0, 0, 1, 1], [], []>} : vector<8x128xbf16>, vector<128x128xbf16>, vector<8x128xf32> -> vector<8x128xf32>
    %c0_11 = arith.constant 0 : index
    %c0_12 = arith.constant 0 : index
    %13 = vector.load %arg5[%c0_11, %c0_12] : memref<1x128xf32, #tpu.memory_space<vmem>>, vector<1x128xf32>
    %14 = vector.broadcast %13 : vector<1x128xf32> to vector<8x128xf32>
    %15 = arith.addf %12, %14 : vector<8x128xf32>
    %cst_13 = arith.constant 0.000000e+00 : f32
    %16 = vector.broadcast %cst_13 : f32 to vector<8x128xf32>
    %17 = arith.maximumf %15, %16 : vector<8x128xf32>
    %c0_14 = arith.constant 0 : index
    %c0_15 = arith.constant 0 : index
    %18 = vector.load %arg19[%c0_14, %c0_15] : memref<8x128xf32, #tpu.memory_space<vmem>>, vector<8x128xf32>
    tpu.vector_store %arg19[%c0_14, %c0_15], %17 {strides = array<i32>} : memref<8x128xf32, #tpu.memory_space<vmem>>, vector<8x128xf32>,
    %19 = arith.truncf %17 : vector<8x128xf32> to vector<8x128xbf16>
    %c0_16 = arith.constant 0 : index
    %c0_17 = arith.constant 0 : index
    %20 = vector.load %arg6[%c0_16, %c0_17] : memref<128x128xbf16, #tpu.memory_space<vmem>>, vector<128x128xbf16>
    %cst_18 = arith.constant dense<0.000000e+00> : vector<8x128xf32>
    %21 = tpu.matmul %19, %20, %cst_18 {dimension_numbers = #tpu.dot_dimension_numbers<[1], [0], [0], [1], [0, 0, 1, 1], [], []>} : vector<8x128xbf16>, vector<128x128xbf16>, vector<8x128xf32> -> vector<8x128xf32>
    %c0_19 = arith.constant 0 : index
    %c0_20 = arith.constant 0 : index
    %22 = vector.load %arg7[%c0_19, %c0_20] : memref<1x128xf32, #tpu.memory_space<vmem>>, vector<1x128xf32>
    %23 = vector.broadcast %22 : vector<1x128xf32> to vector<8x128xf32>
    %24 = arith.addf %21, %23 : vector<8x128xf32>
    %cst_21 = arith.constant 0.000000e+00 : f32
    %25 = vector.broadcast %cst_21 : f32 to vector<8x128xf32>
    %26 = arith.maximumf %24, %25 : vector<8x128xf32>
    %c0_22 = arith.constant 0 : index
    %c0_23 = arith.constant 0 : index
    %27 = vector.load %arg20[%c0_22, %c0_23] : memref<8x128xf32, #tpu.memory_space<vmem>>, vector<8x128xf32>
    tpu.vector_store %arg20[%c0_22, %c0_23], %26 {strides = array<i32>} : memref<8x128xf32, #tpu.memory_space<vmem>>, vector<8x128xf32>,
    %28 = arith.truncf %26 : vector<8x128xf32> to vector<8x128xbf16>
    %c0_24 = arith.constant 0 : index
    %c0_25 = arith.constant 0 : index
    %29 = vector.load %arg8[%c0_24, %c0_25] : memref<128x128xbf16, #tpu.memory_space<vmem>>, vector<128x128xbf16>
    %cst_26 = arith.constant dense<0.000000e+00> : vector<8x128xf32>
    %30 = tpu.matmul %28, %29, %cst_26 {dimension_numbers = #tpu.dot_dimension_numbers<[1], [0], [0], [1], [0, 0, 1, 1], [], []>} : vector<8x128xbf16>, vector<128x128xbf16>, vector<8x128xf32> -> vector<8x128xf32>
    %c0_27 = arith.constant 0 : index
    %c0_28 = arith.constant 0 : index
    %31 = vector.load %arg9[%c0_27, %c0_28] : memref<1x128xf32, #tpu.memory_space<vmem>>, vector<1x128xf32>
    %32 = vector.broadcast %31 : vector<1x128xf32> to vector<8x128xf32>
    %33 = arith.addf %30, %32 : vector<8x128xf32>
    %cst_29 = arith.constant 0.000000e+00 : f32
    %34 = vector.broadcast %cst_29 : f32 to vector<8x128xf32>
    %35 = arith.maximumf %33, %34 : vector<8x128xf32>
    %c0_30 = arith.constant 0 : index
    %c0_31 = arith.constant 0 : index
    %36 = vector.load %arg21[%c0_30, %c0_31] : memref<8x128xf32, #tpu.memory_space<vmem>>, vector<8x128xf32>
    tpu.vector_store %arg21[%c0_30, %c0_31], %35 {strides = array<i32>} : memref<8x128xf32, #tpu.memory_space<vmem>>, vector<8x128xf32>,
    %37 = arith.truncf %35 : vector<8x128xf32> to vector<8x128xbf16>
    %c0_32 = arith.constant 0 : index
    %c0_33 = arith.constant 0 : index
    %38 = vector.load %arg10[%c0_32, %c0_33] : memref<128x128xbf16, #tpu.memory_space<vmem>>, vector<128x128xbf16>
    %cst_34 = arith.constant dense<0.000000e+00> : vector<8x128xf32>
    %39 = tpu.matmul %37, %38, %cst_34 {dimension_numbers = #tpu.dot_dimension_numbers<[1], [0], [0], [1], [0, 0, 1, 1], [], []>} : vector<8x128xbf16>, vector<128x128xbf16>, vector<8x128xf32> -> vector<8x128xf32>
    %c0_35 = arith.constant 0 : index
    %c0_36 = arith.constant 0 : index
    %40 = vector.load %arg11[%c0_35, %c0_36] : memref<1x128xf32, #tpu.memory_space<vmem>>, vector<1x128xf32>
    %41 = vector.broadcast %40 : vector<1x128xf32> to vector<8x128xf32>
    %42 = arith.addf %39, %41 : vector<8x128xf32>
    %c0_37 = arith.constant 0 : index
    %c0_38 = arith.constant 0 : index
    %43 = vector.load %arg22[%c0_37, %c0_38] : memref<8x128xf32, #tpu.memory_space<vmem>>, vector<8x128xf32>
    tpu.vector_store %arg22[%c0_37, %c0_38], %42 {strides = array<i32>} : memref<8x128xf32, #tpu.memory_space<vmem>>, vector<8x128xf32>,
    %44 = arith.truncf %17 : vector<8x128xf32> to vector<8x128xbf16>
    %c0_39 = arith.constant 0 : index
    %c0_40 = arith.constant 0 : index
    %45 = vector.load %arg12[%c0_39, %c0_40] : memref<128x128xbf16, #tpu.memory_space<vmem>>, vector<128x128xbf16>
    %cst_41 = arith.constant dense<0.000000e+00> : vector<8x128xf32>
    %46 = tpu.matmul %44, %45, %cst_41 {dimension_numbers = #tpu.dot_dimension_numbers<[1], [0], [0], [1], [0, 0, 1, 1], [], []>} : vector<8x128xbf16>, vector<128x128xbf16>, vector<8x128xf32> -> vector<8x128xf32>
    %c0_42 = arith.constant 0 : index
    %c0_43 = arith.constant 0 : index
    %47 = vector.load %arg13[%c0_42, %c0_43] : memref<1x128xf32, #tpu.memory_space<vmem>>, vector<1x128xf32>
    %48 = vector.broadcast %47 : vector<1x128xf32> to vector<8x128xf32>
    %49 = arith.addf %46, %48 : vector<8x128xf32>
    %cst_44 = arith.constant 0.000000e+00 : f32
    %50 = vector.broadcast %cst_44 : f32 to vector<8x128xf32>
    %51 = arith.maximumf %49, %50 : vector<8x128xf32>
    %c0_45 = arith.constant 0 : index
    %c0_46 = arith.constant 0 : index
    %52 = vector.load %arg23[%c0_45, %c0_46] : memref<8x128xf32, #tpu.memory_space<vmem>>, vector<8x128xf32>
    tpu.vector_store %arg23[%c0_45, %c0_46], %51 {strides = array<i32>} : memref<8x128xf32, #tpu.memory_space<vmem>>, vector<8x128xf32>,
    %53 = arith.truncf %51 : vector<8x128xf32> to vector<8x128xbf16>
    %c0_47 = arith.constant 0 : index
    %c0_48 = arith.constant 0 : index
    %54 = vector.load %arg14[%c0_47, %c0_48] : memref<128x128xbf16, #tpu.memory_space<vmem>>, vector<128x128xbf16>
    %cst_49 = arith.constant dense<0.000000e+00> : vector<8x128xf32>
    %55 = tpu.matmul %53, %54, %cst_49 {dimension_numbers = #tpu.dot_dimension_numbers<[1], [0], [0], [1], [0, 0, 1, 1], [], []>} : vector<8x128xbf16>, vector<128x128xbf16>, vector<8x128xf32> -> vector<8x128xf32>
    %c0_50 = arith.constant 0 : index
    %c0_51 = arith.constant 0 : index
    %56 = vector.load %arg15[%c0_50, %c0_51] : memref<1x128xf32, #tpu.memory_space<vmem>>, vector<1x128xf32>
    %57 = vector.broadcast %56 : vector<1x128xf32> to vector<8x128xf32>
    %58 = arith.addf %55, %57 : vector<8x128xf32>
    %cst_52 = arith.constant 0.000000e+00 : f32
    %59 = vector.broadcast %cst_52 : f32 to vector<8x128xf32>
    %60 = arith.maximumf %58, %59 : vector<8x128xf32>
    %c0_53 = arith.constant 0 : index
    %c0_54 = arith.constant 0 : index
    %61 = vector.load %arg24[%c0_53, %c0_54] : memref<8x128xf32, #tpu.memory_space<vmem>>, vector<8x128xf32>
    tpu.vector_store %arg24[%c0_53, %c0_54], %60 {strides = array<i32>} : memref<8x128xf32, #tpu.memory_space<vmem>>, vector<8x128xf32>,
    %62 = arith.truncf %60 : vector<8x128xf32> to vector<8x128xbf16>
    %c0_55 = arith.constant 0 : index
    %c0_56 = arith.constant 0 : index
    %63 = vector.load %arg16[%c0_55, %c0_56] : memref<128x128xbf16, #tpu.memory_space<vmem>>, vector<128x128xbf16>
    %cst_57 = arith.constant dense<0.000000e+00> : vector<8x128xf32>
    %64 = tpu.matmul %62, %63, %cst_57 {dimension_numbers = #tpu.dot_dimension_numbers<[1], [0], [0], [1], [0, 0, 1, 1], [], []>} : vector<8x128xbf16>, vector<128x128xbf16>, vector<8x128xf32> -> vector<8x128xf32>
    %c0_58 = arith.constant 0 : index
    %c0_59 = arith.constant 0 : index
    %65 = vector.load %arg17[%c0_58, %c0_59] : memref<1x128xf32, #tpu.memory_space<vmem>>, vector<1x128xf32>
    %66 = vector.broadcast %65 : vector<1x128xf32> to vector<8x128xf32>
    %67 = arith.addf %64, %66 : vector<8x128xf32>
    %c0_60 = arith.constant 0 : index
    %c0_61 = arith.constant 0 : index
    %68 = vector.load %arg25[%c0_60, %c0_61] : memref<8x128xf32, #tpu.memory_space<vmem>>, vector<8x128xf32>
    tpu.vector_store %arg25[%c0_60, %c0_61], %67 {strides = array<i32>} : memref<8x128xf32, #tpu.memory_space<vmem>>, vector<8x128xf32>,
    return
  }
  func.func @transform_0(%arg0: i32) -> (i32, i32) {
    %c0_i32 = arith.constant 0 : i32
    %c0_i32_0 = arith.constant 0 : i32
    return %arg0, %c0_i32 : i32, i32
  }
  func.func @transform_1(%arg0: i32) -> (i32, i32) {
    %c0_i32 = arith.constant 0 : i32
    %c0_i32_0 = arith.constant 0 : i32
    %c0_i32_1 = arith.constant 0 : i32
    return %c0_i32, %c0_i32_0 : i32, i32
  }
  func.func @transform_2(%arg0: i32) -> (i32, i32) {
    %c0_i32 = arith.constant 0 : i32
    %c0_i32_0 = arith.constant 0 : i32
    %c0_i32_1 = arith.constant 0 : i32
    return %c0_i32, %c0_i32_0 : i32, i32
  }
  func.func @transform_3(%arg0: i32) -> (i32, i32) {
    %c0_i32 = arith.constant 0 : i32
    %c0_i32_0 = arith.constant 0 : i32
    %c0_i32_1 = arith.constant 0 : i32
    return %c0_i32, %c0_i32_0 : i32, i32
  }
  func.func @transform_4(%arg0: i32) -> (i32, i32) {
    %c0_i32 = arith.constant 0 : i32
    %c0_i32_0 = arith.constant 0 : i32
    %c0_i32_1 = arith.constant 0 : i32
    return %c0_i32, %c0_i32_0 : i32, i32
  }
  func.func @transform_5(%arg0: i32) -> (i32, i32) {
    %c0_i32 = arith.constant 0 : i32
    %c0_i32_0 = arith.constant 0 : i32
    %c0_i32_1 = arith.constant 0 : i32
    return %c0_i32, %c0_i32_0 : i32, i32
  }
  func.func @transform_6(%arg0: i32) -> (i32, i32) {
    %c0_i32 = arith.constant 0 : i32
    %c0_i32_0 = arith.constant 0 : i32
    %c0_i32_1 = arith.constant 0 : i32
    return %c0_i32, %c0_i32_0 : i32, i32
  }
  func.func @transform_7(%arg0: i32) -> (i32, i32) {
    %c0_i32 = arith.constant 0 : i32
    %c0_i32_0 = arith.constant 0 : i32
    %c0_i32_1 = arith.constant 0 : i32
    return %c0_i32, %c0_i32_0 : i32, i32
  }
  func.func @transform_8(%arg0: i32) -> (i32, i32) {
    %c0_i32 = arith.constant 0 : i32
    %c0_i32_0 = arith.constant 0 : i32
    %c0_i32_1 = arith.constant 0 : i32
    return %c0_i32, %c0_i32_0 : i32, i32
  }
  func.func @transform_9(%arg0: i32) -> (i32, i32) {
    %c0_i32 = arith.constant 0 : i32
    %c0_i32_0 = arith.constant 0 : i32
    %c0_i32_1 = arith.constant 0 : i32
    return %c0_i32, %c0_i32_0 : i32, i32
  }
  func.func @transform_10(%arg0: i32) -> (i32, i32) {
    %c0_i32 = arith.constant 0 : i32
    %c0_i32_0 = arith.constant 0 : i32
    %c0_i32_1 = arith.constant 0 : i32
    return %c0_i32, %c0_i32_0 : i32, i32
  }
  func.func @transform_11(%arg0: i32) -> (i32, i32) {
    %c0_i32 = arith.constant 0 : i32
    %c0_i32_0 = arith.constant 0 : i32
    %c0_i32_1 = arith.constant 0 : i32
    return %c0_i32, %c0_i32_0 : i32, i32
  }
  func.func @transform_12(%arg0: i32) -> (i32, i32) {
    %c0_i32 = arith.constant 0 : i32
    %c0_i32_0 = arith.constant 0 : i32
    %c0_i32_1 = arith.constant 0 : i32
    return %c0_i32, %c0_i32_0 : i32, i32
  }
  func.func @transform_13(%arg0: i32) -> (i32, i32) {
    %c0_i32 = arith.constant 0 : i32
    %c0_i32_0 = arith.constant 0 : i32
    %c0_i32_1 = arith.constant 0 : i32
    return %c0_i32, %c0_i32_0 : i32, i32
  }
  func.func @transform_14(%arg0: i32) -> (i32, i32) {
    %c0_i32 = arith.constant 0 : i32
    %c0_i32_0 = arith.constant 0 : i32
    %c0_i32_1 = arith.constant 0 : i32
    return %c0_i32, %c0_i32_0 : i32, i32
  }
  func.func @transform_15(%arg0: i32) -> (i32, i32) {
    %c0_i32 = arith.constant 0 : i32
    %c0_i32_0 = arith.constant 0 : i32
    %c0_i32_1 = arith.constant 0 : i32
    return %c0_i32, %c0_i32_0 : i32, i32
  }
  func.func @transform_16(%arg0: i32) -> (i32, i32) {
    %c0_i32 = arith.constant 0 : i32
    %c0_i32_0 = arith.constant 0 : i32
    %c0_i32_1 = arith.constant 0 : i32
    return %c0_i32, %c0_i32_0 : i32, i32
  }
  func.func @transform_17(%arg0: i32) -> (i32, i32) {
    %c0_i32 = arith.constant 0 : i32
    %c0_i32_0 = arith.constant 0 : i32
    return %arg0, %c0_i32 : i32, i32
  }
  func.func @transform_18(%arg0: i32) -> (i32, i32) {
    %c0_i32 = arith.constant 0 : i32
    %c0_i32_0 = arith.constant 0 : i32
    return %arg0, %c0_i32 : i32, i32
  }
  func.func @transform_19(%arg0: i32) -> (i32, i32) {
    %c0_i32 = arith.constant 0 : i32
    %c0_i32_0 = arith.constant 0 : i32
    return %arg0, %c0_i32 : i32, i32
  }
  func.func @transform_20(%arg0: i32) -> (i32, i32) {
    %c0_i32 = arith.constant 0 : i32
    %c0_i32_0 = arith.constant 0 : i32
    return %arg0, %c0_i32 : i32, i32
  }
  func.func @transform_21(%arg0: i32) -> (i32, i32) {
    %c0_i32 = arith.constant 0 : i32
    %c0_i32_0 = arith.constant 0 : i32
    return %arg0, %c0_i32 : i32, i32
  }
  func.func @transform_22(%arg0: i32) -> (i32, i32) {
    %c0_i32 = arith.constant 0 : i32
    %c0_i32_0 = arith.constant 0 : i32
    return %arg0, %c0_i32 : i32, i32
  }
  func.func @transform_23(%arg0: i32) -> (i32, i32) {
    %c0_i32 = arith.constant 0 : i32
    %c0_i32_0 = arith.constant 0 : i32
    return %arg0, %c0_i32 : i32, i32
  }
  func.func @transform_24(%arg0: i32) -> (i32, i32) {
    %c0_i32 = arith.constant 0 : i32
    %c0_i32_0 = arith.constant 0 : i32
    return %arg0, %c0_i32 : i32, i32
  }
}

</mosaic_0001>

<llo_original>
// kernel: mlp_reg_fpad_forward.1
$region0: #{mlp_reg_fpad_forward.1}
  #allocation0 [shape = 'u32[]', space=smem, size = 0x4, offset = 0x4, fixed_abs, tag = 'smem constant byte address 0x4 - core index']
  #allocation1 [shape = 'u32[144,128]{1,0:T(1,128)}', space=vmem, size = 0x12000, scoped, tag = 'internal scratch']
  %s0 = inlined_call_operand.vmem [shape: f32[8,384], index: 0, kind: input, shape index: {}]
  %s1 = inlined_call_operand.vmem [shape: bf16[384,128], index: 1, kind: input, shape index: {}]
  %s2 = inlined_call_operand.vmem [shape: f32[1,128], index: 2, kind: input, shape index: {}]
  %s3 = inlined_call_operand.vmem [shape: bf16[128,128], index: 3, kind: input, shape index: {}]
  %s4 = inlined_call_operand.vmem [shape: f32[1,128], index: 4, kind: input, shape index: {}]
  %s5 = inlined_call_operand.vmem [shape: bf16[128,128], index: 5, kind: input, shape index: {}]
  %s6 = inlined_call_operand.vmem [shape: f32[1,128], index: 6, kind: input, shape index: {}]
  %s7 = inlined_call_operand.vmem [shape: bf16[128,128], index: 7, kind: input, shape index: {}]
  %s8 = inlined_call_operand.vmem [shape: f32[1,128], index: 8, kind: input, shape index: {}]
  %s9 = inlined_call_operand.vmem [shape: bf16[128,128], index: 9, kind: input, shape index: {}]
  %s10 = inlined_call_operand.vmem [shape: f32[1,128], index: 10, kind: input, shape index: {}]
  %s11 = inlined_call_operand.vmem [shape: bf16[128,128], index: 11, kind: input, shape index: {}]
  %s12 = inlined_call_operand.vmem [shape: f32[1,128], index: 12, kind: input, shape index: {}]
  %s13 = inlined_call_operand.vmem [shape: bf16[128,128], index: 13, kind: input, shape index: {}]
  %s14 = inlined_call_operand.vmem [shape: f32[1,128], index: 14, kind: input, shape index: {}]
  %s15 = inlined_call_operand.vmem [shape: bf16[128,128], index: 15, kind: input, shape index: {}]
  %s16 = inlined_call_operand.vmem [shape: f32[1,128], index: 16, kind: input, shape index: {}]
  %s17 = inlined_call_operand.hbm [shape: f32[8,128], index: 17, kind: output, shape index: {0}]
  %s18 = inlined_call_operand.hbm [shape: f32[8,128], index: 18, kind: output, shape index: {1}]
  %s19 = inlined_call_operand.hbm [shape: f32[8,128], index: 19, kind: output, shape index: {2}]
  %s20 = inlined_call_operand.hbm [shape: f32[8,128], index: 20, kind: output, shape index: {3}]
  %s21 = inlined_call_operand.vmem [shape: f32[8,128], index: 21, kind: output, shape index: {4}]
  %s22 = inlined_call_operand.vmem [shape: f32[8,128], index: 22, kind: output, shape index: {5}]
  %s23 = inlined_call_operand.vmem [shape: f32[8,128], index: 23, kind: output, shape index: {6}]
  %s24 = inlined_call_operand.vmem [shape: f32[8,128], index: 24, kind: output, shape index: {7}]
  %25 = xla_tuple %s17, %s18, %s19, %s20, %s21, %s22, %s23, %s24
  %s26 = sld [smem:[#allocation0]]
  $region134: #{mlp_reg_fpad_forward.1} parent=0
    _
  %s28 = ssub.s32 1, %s26
  %s29 = scalar_select 0, %s28, %s26
  $region1: #{mlp_reg_fpad_forward.1} parent=0
    #allocation2 [shape = 'u8[4096]{0}', space=vmem, size = 0x1000, scoped, tag = 'output window, operand 0, single buffered']
    #allocation3 [shape = 's32[1]{0}', space=sflag, size = 0x4, scoped, tag = 'scoped memory for mlp_reg_fpad_forward.1']
    #allocation4 [shape = 'u8[4096]{0}', space=vmem, size = 0x1000, scoped, tag = 'output window, operand 1, single buffered']
    #allocation5 [shape = 's32[1]{0}', space=sflag, size = 0x4, scoped, tag = 'scoped memory for mlp_reg_fpad_forward.1']
    #allocation6 [shape = 'u8[4096]{0}', space=vmem, size = 0x1000, scoped, tag = 'output window, operand 2, single buffered']
    #allocation7 [shape = 'u8[4096]{0}', space=vmem, size = 0x1000, scoped, tag = 'output window, operand 3, single buffered']
    #allocation8 [shape = 's32[1]{0}', space=sflag, size = 0x4, scoped, tag = 'scoped memory for mlp_reg_fpad_forward.1']
    %30 = vsyncpa [#allocation3], 0
    %31 = vsyncpa [#allocation5], 0
    %32 = vsyncpa [#allocation8], 0
    // Predicated region
    $region2: #{mlp_reg_fpad_forward.1} parent=1 // pred_check
      _
    $region3: #{mlp_reg_fpad_forward.1} parent=1 // pred_check_branch
      %34 = sbr.rel (0) target = $region5
    $region4: #{mlp_reg_fpad_forward.1} parent=1 // pred_region
      _
    $region5: #{mlp_reg_fpad_forward.1} parent=1 // pred_fallthru
      _
    // Predicated region
    $region6: #{mlp_reg_fpad_forward.1} parent=1 // pred_check
      _
    $region7: #{mlp_reg_fpad_forward.1} parent=1 // pred_check_branch
      %36 = sbr.rel (0) target = $region9
    $region8: #{mlp_reg_fpad_forward.1} parent=1 // pred_region
      _
    $region9: #{mlp_reg_fpad_forward.1} parent=1 // pred_fallthru
      _
    // Predicated region
    $region10: #{mlp_reg_fpad_forward.1} parent=1 // pred_check
      _
    $region11: #{mlp_reg_fpad_forward.1} parent=1 // pred_check_branch
      %38 = sbr.rel (0) target = $region13
    $region12: #{mlp_reg_fpad_forward.1} parent=1 // pred_region
      _
    $region13: #{mlp_reg_fpad_forward.1} parent=1 // pred_fallthru
      _
    // Predicated region
    $region14: #{mlp_reg_fpad_forward.1} parent=1 // pred_check
      _
    $region15: #{mlp_reg_fpad_forward.1} parent=1 // pred_check_branch
      %40 = sbr.rel (0) target = $region17
    $region16: #{mlp_reg_fpad_forward.1} parent=1 // pred_region
      _
    $region17: #{mlp_reg_fpad_forward.1} parent=1 // pred_fallthru
      _
    // Predicated region
    $region18: #{mlp_reg_fpad_forward.1} parent=1 // pred_check
      _
    $region19: #{mlp_reg_fpad_forward.1} parent=1 // pred_check_branch
      %42 = sbr.rel (0) target = $region21
    $region20: #{mlp_reg_fpad_forward.1} parent=1 // pred_region
      _
    $region21: #{mlp_reg_fpad_forward.1} parent=1 // pred_fallthru
      _
    // Predicated region
    $region22: #{mlp_reg_fpad_forward.1} parent=1 // pred_check
      _
    $region23: #{mlp_reg_fpad_forward.1} parent=1 // pred_check_branch
      %44 = sbr.rel (0) target = $region25
    $region24: #{mlp_reg_fpad_forward.1} parent=1 // pred_region
      _
    $region25: #{mlp_reg_fpad_forward.1} parent=1 // pred_fallthru
      _
    // Predicated region
    $region26: #{mlp_reg_fpad_forward.1} parent=1 // pred_check
      _
    $region27: #{mlp_reg_fpad_forward.1} parent=1 // pred_check_branch
      %46 = sbr.rel (0) target = $region29
    $region28: #{mlp_reg_fpad_forward.1} parent=1 // pred_region
      _
    $region29: #{mlp_reg_fpad_forward.1} parent=1 // pred_fallthru
      _
    // Predicated region
    $region30: #{mlp_reg_fpad_forward.1} parent=1 // pred_check
      _
    $region31: #{mlp_reg_fpad_forward.1} parent=1 // pred_check_branch
      %48 = sbr.rel (0) target = $region33
    $region32: #{mlp_reg_fpad_forward.1} parent=1 // pred_region
      _
    $region33: #{mlp_reg_fpad_forward.1} parent=1 // pred_fallthru
      _
    // Predicated region
    $region34: #{mlp_reg_fpad_forward.1} parent=1 // pred_check
      _
    $region35: #{mlp_reg_fpad_forward.1} parent=1 // pred_check_branch
      %50 = sbr.rel (0) target = $region37
    $region36: #{mlp_reg_fpad_forward.1} parent=1 // pred_region
      _
    $region37: #{mlp_reg_fpad_forward.1} parent=1 // pred_fallthru
      _
    // Predicated region
    $region38: #{mlp_reg_fpad_forward.1} parent=1 // pred_check
      _
    $region39: #{mlp_reg_fpad_forward.1} parent=1 // pred_check_branch
      %52 = sbr.rel (0) target = $region41
    $region40: #{mlp_reg_fpad_forward.1} parent=1 // pred_region
      _
    $region41: #{mlp_reg_fpad_forward.1} parent=1 // pred_fallthru
      _
    // Predicated region
    $region42: #{mlp_reg_fpad_forward.1} parent=1 // pred_check
      _
    $region43: #{mlp_reg_fpad_forward.1} parent=1 // pred_check_branch
      %54 = sbr.rel (0) target = $region45
    $region44: #{mlp_reg_fpad_forward.1} parent=1 // pred_region
      _
    $region45: #{mlp_reg_fpad_forward.1} parent=1 // pred_fallthru
      _
    // Predicated region
    $region46: #{mlp_reg_fpad_forward.1} parent=1 // pred_check
      _
    $region47: #{mlp_reg_fpad_forward.1} parent=1 // pred_check_branch
      %56 = sbr.rel (0) target = $region49
    $region48: #{mlp_reg_fpad_forward.1} parent=1 // pred_region
      _
    $region49: #{mlp_reg_fpad_forward.1} parent=1 // pred_fallthru
      _
    // Predicated region
    $region50: #{mlp_reg_fpad_forward.1} parent=1 // pred_check
      _
    $region51: #{mlp_reg_fpad_forward.1} parent=1 // pred_check_branch
      %58 = sbr.rel (0) target = $region53
    $region52: #{mlp_reg_fpad_forward.1} parent=1 // pred_region
      _
    $region53: #{mlp_reg_fpad_forward.1} parent=1 // pred_fallthru
      _
    // Predicated region
    $region54: #{mlp_reg_fpad_forward.1} parent=1 // pred_check
      _
    $region55: #{mlp_reg_fpad_forward.1} parent=1 // pred_check_branch
      %60 = sbr.rel (0) target = $region57
    $region56: #{mlp_reg_fpad_forward.1} parent=1 // pred_region
      _
    $region57: #{mlp_reg_fpad_forward.1} parent=1 // pred_fallthru
      _
    // Predicated region
    $region58: #{mlp_reg_fpad_forward.1} parent=1 // pred_check
      _
    $region59: #{mlp_reg_fpad_forward.1} parent=1 // pred_check_branch
      %62 = sbr.rel (0) target = $region61
    $region60: #{mlp_reg_fpad_forward.1} parent=1 // pred_region
      _
    $region61: #{mlp_reg_fpad_forward.1} parent=1 // pred_fallthru
      _
    // Predicated region
    $region62: #{mlp_reg_fpad_forward.1} parent=1 // pred_check
      _
    $region63: #{mlp_reg_fpad_forward.1} parent=1 // pred_check_branch
      %64 = sbr.rel (0) target = $region65
    $region64: #{mlp_reg_fpad_forward.1} parent=1 // pred_region
      _
    $region65: #{mlp_reg_fpad_forward.1} parent=1 // pred_fallthru
      _
    // Predicated region
    $region66: #{mlp_reg_fpad_forward.1} parent=1 // pred_check
      _
    $region67: #{mlp_reg_fpad_forward.1} parent=1 // pred_check_branch
      %66 = sbr.rel (0) target = $region69
    $region68: #{mlp_reg_fpad_forward.1} parent=1 // pred_region
      _
    $region69: #{mlp_reg_fpad_forward.1} parent=1 // pred_fallthru
      _
    %v68 = vld [vmem:[%s0] sm:$0xff]
    %v69 = vld [vmem:[%s0 + $0x8] sm:$0xff]
    %v70 = vld [vmem:[%s0 + $0x10] sm:$0xff]
    %v71 = vpack.c.bf16 %v68, %v68
    %v72 = vpack.c.bf16 %v69, %v69
    %v73 = vpack.c.bf16 %v70, %v70
    %v74 = vld [vmem:[%s1] sm:$0xf]
    %v75 = vld [vmem:[%s1 + $0x4] sm:$0xf]
    %v76 = vld [vmem:[%s1 + $0x8] sm:$0xf]
    %v77 = vld [vmem:[%s1 + $0xc] sm:$0xf]
    %v78 = vld [vmem:[%s1 + $0x10] sm:$0xf]
    %v79 = vld [vmem:[%s1 + $0x14] sm:$0xf]
    %v80 = vld [vmem:[%s1 + $0x18] sm:$0xf]
    %v81 = vld [vmem:[%s1 + $0x1c] sm:$0xf]
    %v82 = vld [vmem:[%s1 + $0x20] sm:$0xf]
    %v83 = vld [vmem:[%s1 + $0x24] sm:$0xf]
    %v84 = vld [vmem:[%s1 + $0x28] sm:$0xf]
    %v85 = vld [vmem:[%s1 + $0x2c] sm:$0xf]
    %v86 = vld [vmem:[%s1 + $0x30] sm:$0xf]
    %v87 = vld [vmem:[%s1 + $0x34] sm:$0xf]
    %v88 = vld [vmem:[%s1 + $0x38] sm:$0xf]
    %v89 = vld [vmem:[%s1 + $0x3c] sm:$0xf]
    %v90 = vld [vmem:[%s1 + $0x40] sm:$0xf]
    %v91 = vld [vmem:[%s1 + $0x44] sm:$0xf]
    %v92 = vld [vmem:[%s1 + $0x48] sm:$0xf]
    %v93 = vld [vmem:[%s1 + $0x4c] sm:$0xf]
    %v94 = vld [vmem:[%s1 + $0x50] sm:$0xf]
    %v95 = vld [vmem:[%s1 + $0x54] sm:$0xf]
    %v96 = vld [vmem:[%s1 + $0x58] sm:$0xf]
    %v97 = vld [vmem:[%s1 + $0x5c] sm:$0xf]
    %v98 = vld [vmem:[%s1 + $0x60] sm:$0xf]
    %v99 = vld [vmem:[%s1 + $0x64] sm:$0xf]
    %v100 = vld [vmem:[%s1 + $0x68] sm:$0xf]
    %v101 = vld [vmem:[%s1 + $0x6c] sm:$0xf]
    %v102 = vld [vmem:[%s1 + $0x70] sm:$0xf]
    %v103 = vld [vmem:[%s1 + $0x74] sm:$0xf]
    %v104 = vld [vmem:[%s1 + $0x78] sm:$0xf]
    %v105 = vld [vmem:[%s1 + $0x7c] sm:$0xf]
    %v106 = vld [vmem:[%s1 + $0x80] sm:$0xf]
    %v107 = vld [vmem:[%s1 + $0x84] sm:$0xf]
    %v108 = vld [vmem:[%s1 + $0x88] sm:$0xf]
    %v109 = vld [vmem:[%s1 + $0x8c] sm:$0xf]
    %v110 = vld [vmem:[%s1 + $0x90] sm:$0xf]
    %v111 = vld [vmem:[%s1 + $0x94] sm:$0xf]
    %v112 = vld [vmem:[%s1 + $0x98] sm:$0xf]
    %v113 = vld [vmem:[%s1 + $0x9c] sm:$0xf]
    %v114 = vld [vmem:[%s1 + $0xa0] sm:$0xf]
    %v115 = vld [vmem:[%s1 + $0xa4] sm:$0xf]
    %v116 = vld [vmem:[%s1 + $0xa8] sm:$0xf]
    %v117 = vld [vmem:[%s1 + $0xac] sm:$0xf]
    %v118 = vld [vmem:[%s1 + $0xb0] sm:$0xf]
    %v119 = vld [vmem:[%s1 + $0xb4] sm:$0xf]
    %v120 = vld [vmem:[%s1 + $0xb8] sm:$0xf]
    %v121 = vld [vmem:[%s1 + $0xbc] sm:$0xf]
    %v122 = vld [vmem:[%s2] sm:$0x1]
    %v124 = vlaneseq
    %v125 = vshrl.u32 %v124, 7
    %v126 = vsub.s32 0, %v125
    %v127 = vrot.slane %v122, %v126
    %v177 = vunpack.c.l.b16 %v74
    %v178 = vunpack.c.l.b16 %v75
    %v179 = vunpack.c.l.b16 %v76
    %v180 = vunpack.c.l.b16 %v77
    %v181 = vunpack.c.l.b16 %v78
    %v182 = vunpack.c.l.b16 %v79
    %v183 = vunpack.c.l.b16 %v80
    %v184 = vunpack.c.l.b16 %v81
    %v185 = vunpack.c.l.b16 %v82
    %v186 = vunpack.c.l.b16 %v83
    %v187 = vunpack.c.l.b16 %v84
    %v188 = vunpack.c.l.b16 %v85
    %v189 = vunpack.c.l.b16 %v86
    %v190 = vunpack.c.l.b16 %v87
    %v191 = vunpack.c.l.b16 %v88
    %v192 = vunpack.c.l.b16 %v89
    %v193 = vunpack.c.l.b16 %v90
    %v194 = vunpack.c.l.b16 %v91
    %v195 = vunpack.c.l.b16 %v92
    %v196 = vunpack.c.l.b16 %v93
    %v197 = vunpack.c.l.b16 %v94
    %v198 = vunpack.c.l.b16 %v95
    %v199 = vunpack.c.l.b16 %v96
    %v200 = vunpack.c.l.b16 %v97
    %v201 = vunpack.c.l.b16 %v98
    %v202 = vunpack.c.l.b16 %v99
    %v203 = vunpack.c.l.b16 %v100
    %v204 = vunpack.c.l.b16 %v101
    %v205 = vunpack.c.l.b16 %v102
    %v206 = vunpack.c.l.b16 %v103
    %v207 = vunpack.c.l.b16 %v104
    %v208 = vunpack.c.l.b16 %v105
    %v209 = vunpack.c.l.b16 %v106
    %v210 = vunpack.c.l.b16 %v107
    %v211 = vunpack.c.l.b16 %v108
    %v212 = vunpack.c.l.b16 %v109
    %v213 = vunpack.c.l.b16 %v110
    %v214 = vunpack.c.l.b16 %v111
    %v215 = vunpack.c.l.b16 %v112
    %v216 = vunpack.c.l.b16 %v113
    %v217 = vunpack.c.l.b16 %v114
    %v218 = vunpack.c.l.b16 %v115
    %v219 = vunpack.c.l.b16 %v116
    %v220 = vunpack.c.l.b16 %v117
    %v221 = vunpack.c.l.b16 %v118
    %v222 = vunpack.c.l.b16 %v119
    %v223 = vunpack.c.l.b16 %v120
    %v224 = vunpack.c.l.b16 %v121
    %v225 = vpack.c.b16 %v178, %v177
    %v226 = vpack.c.b16 %v180, %v179
    %v227 = vpack.c.b16 %v182, %v181
    %v228 = vpack.c.b16 %v184, %v183
    %v229 = vpack.c.b16 %v186, %v185
    %v230 = vpack.c.b16 %v188, %v187
    %v231 = vpack.c.b16 %v190, %v189
    %v232 = vpack.c.b16 %v192, %v191
    %v233 = vpack.c.b16 %v194, %v193
    %v234 = vpack.c.b16 %v196, %v195
    %v235 = vpack.c.b16 %v198, %v197
    %v236 = vpack.c.b16 %v200, %v199
    %v237 = vpack.c.b16 %v202, %v201
    %v238 = vpack.c.b16 %v204, %v203
    %v239 = vpack.c.b16 %v206, %v205
    %v240 = vpack.c.b16 %v208, %v207
    %v241 = vpack.c.b16 %v210, %v209
    %v242 = vpack.c.b16 %v212, %v211
    %v243 = vpack.c.b16 %v214, %v213
    %v244 = vpack.c.b16 %v216, %v215
    %v245 = vpack.c.b16 %v218, %v217
    %v246 = vpack.c.b16 %v220, %v219
    %v247 = vpack.c.b16 %v222, %v221
    %v248 = vpack.c.b16 %v224, %v223
    %273 = vmatprep.subr.bf16.mxu0 0
    %274 = vmatpush1.bf16.msra.mxu0 %v232
    %275 = vmatprep.subr.bf16.mxu0 0
    %276 = vmatpush1.bf16.msra.mxu0 %v231
    %277 = vmatprep.subr.bf16.mxu0 0
    %278 = vmatpush1.bf16.msra.mxu0 %v230
    %279 = vmatprep.subr.bf16.mxu0 0
    %280 = vmatpush1.bf16.msra.mxu0 %v229
    %281 = vmatprep.subr.bf16.mxu0 0
    %282 = vmatpush1.bf16.msra.mxu0 %v228
    %283 = vmatprep.subr.bf16.mxu0 0
    %284 = vmatpush1.bf16.msra.mxu0 %v227
    %285 = vmatprep.subr.bf16.mxu0 0
    %286 = vmatpush1.bf16.msra.mxu0 %v226
    %287 = vmatprep.subr.bf16.mxu0 0
    %288 = vmatpush1.bf16.msra.mxu0 %v225
    %289 = vmatprep.subr.bf16.mxu0 0
    %290 = vmatpush2.bf16.msra.mxu0 %v240
    %291 = vmatprep.subr.bf16.mxu0 0
    %292 = vmatpush2.bf16.msra.mxu0 %v239
    %293 = vmatprep.subr.bf16.mxu0 0
    %294 = vmatpush2.bf16.msra.mxu0 %v238
    %295 = vmatprep.subr.bf16.mxu0 0
    %296 = vmatpush2.bf16.msra.mxu0 %v237
    %297 = vmatprep.subr.bf16.mxu0 0
    %298 = vmatpush2.bf16.msra.mxu0 %v236
    %299 = vmatprep.subr.bf16.mxu0 0
    %300 = vmatpush2.bf16.msra.mxu0 %v235
    %301 = vmatprep.subr.bf16.mxu0 0
    %302 = vmatpush2.bf16.msra.mxu0 %v234
    %303 = vmatprep.subr.bf16.mxu0 0
    %304 = vmatpush2.bf16.msra.mxu0 %v233
    %305 = vmatprep.mubr.bf16.mxu0 %v72
    %306 = vmatmul.mubr.bf16.gmra.mxu0 %v71
    %v307 = vpop.f32.mrf.mxu0
    %v308 = vadd.f32 %v127, %v307
    %v309 = vpop.f32.mrf.mxu0
    %v310 = vpop.f32.mrf.mxu0
    %v311 = vpop.f32.mrf.mxu0
    %312 = vdwg.mxu0
    %313 = vmatprep.subr.bf16.mxu0 0
    %314 = vmatpush1.bf16.msra.mxu0 %v248
    %315 = vmatprep.subr.bf16.mxu0 0
    %316 = vmatpush1.bf16.msra.mxu0 %v247
    %317 = vmatprep.subr.bf16.mxu0 0
    %318 = vmatpush1.bf16.msra.mxu0 %v246
    %319 = vmatprep.subr.bf16.mxu0 0
    %320 = vmatpush1.bf16.msra.mxu0 %v245
    %321 = vmatprep.subr.bf16.mxu0 0
    %322 = vmatpush1.bf16.msra.mxu0 %v244
    %323 = vmatprep.subr.bf16.mxu0 0
    %324 = vmatpush1.bf16.msra.mxu0 %v243
    %325 = vmatprep.subr.bf16.mxu0 0
    %326 = vmatpush1.bf16.msra.mxu0 %v242
    %327 = vmatprep.subr.bf16.mxu0 0
    %328 = vmatpush1.bf16.msra.mxu0 %v241
    %329 = vmatprep.subr.bf16.mxu0 0
    %330 = vmatpush2.bf16.msra.mxu0 0
    %331 = vmatprep.subr.bf16.mxu0 0
    %332 = vmatpush2.bf16.msra.mxu0 0
    %333 = vmatprep.subr.bf16.mxu0 0
    %334 = vmatpush2.bf16.msra.mxu0 0
    %335 = vmatprep.subr.bf16.mxu0 0
    %336 = vmatpush2.bf16.msra.mxu0 0
    %337 = vmatprep.subr.bf16.mxu0 0
    %338 = vmatpush2.bf16.msra.mxu0 0
    %339 = vmatprep.subr.bf16.mxu0 0
    %340 = vmatpush2.bf16.msra.mxu0 0
    %341 = vmatprep.subr.bf16.mxu0 0
    %342 = vmatpush2.bf16.msra.mxu0 0
    %343 = vmatprep.subr.bf16.mxu0 0
    %344 = vmatpush2.bf16.msra.mxu0 0
    %345 = vmatprep.mubr.bf16.mxu0 0
    %346 = vmatmul.mubr.bf16.gmra.mxu0 %v73
    %v347 = vpop.f32.mrf.mxu0
    %v348 = vadd.f32 %v308, %v347
    %v349 = vpop.f32.mrf.mxu0
    %v350 = vpop.f32.mrf.mxu0
    %v351 = vpop.f32.mrf.mxu0
    %352 = vdwg.mxu0
    %v353 = vmax.f32 %v348, 0.0
    %354 = vst [vmem:[#allocation2] sm:$0xff] %v353
    %v355 = vpack.c.bf16 %v353, %v353
    %v356 = vld [vmem:[%s3] sm:$0xf]
    %v357 = vld [vmem:[%s3 + $0x4] sm:$0xf]
    %v358 = vld [vmem:[%s3 + $0x8] sm:$0xf]
    %v359 = vld [vmem:[%s3 + $0xc] sm:$0xf]
    %v360 = vld [vmem:[%s3 + $0x10] sm:$0xf]
    %v361 = vld [vmem:[%s3 + $0x14] sm:$0xf]
    %v362 = vld [vmem:[%s3 + $0x18] sm:$0xf]
    %v363 = vld [vmem:[%s3 + $0x1c] sm:$0xf]
    %v364 = vld [vmem:[%s3 + $0x20] sm:$0xf]
    %v365 = vld [vmem:[%s3 + $0x24] sm:$0xf]
    %v366 = vld [vmem:[%s3 + $0x28] sm:$0xf]
    %v367 = vld [vmem:[%s3 + $0x2c] sm:$0xf]
    %v368 = vld [vmem:[%s3 + $0x30] sm:$0xf]
    %v369 = vld [vmem:[%s3 + $0x34] sm:$0xf]
    %v370 = vld [vmem:[%s3 + $0x38] sm:$0xf]
    %v371 = vld [vmem:[%s3 + $0x3c] sm:$0xf]
    %v372 = vld [vmem:[%s4] sm:$0x1]
    %v374 = vlaneseq
    %v375 = vshrl.u32 %v374, 7
    %v376 = vsub.s32 0, %v375
    %v377 = vrot.slane %v372, %v376
    %v395 = vunpack.c.l.b16 %v356
    %v396 = vunpack.c.l.b16 %v357
    %v397 = vunpack.c.l.b16 %v358
    %v398 = vunpack.c.l.b16 %v359
    %v399 = vunpack.c.l.b16 %v360
    %v400 = vunpack.c.l.b16 %v361
    %v401 = vunpack.c.l.b16 %v362
    %v402 = vunpack.c.l.b16 %v363
    %v403 = vunpack.c.l.b16 %v364
    %v404 = vunpack.c.l.b16 %v365
    %v405 = vunpack.c.l.b16 %v366
    %v406 = vunpack.c.l.b16 %v367
    %v407 = vunpack.c.l.b16 %v368
    %v408 = vunpack.c.l.b16 %v369
    %v409 = vunpack.c.l.b16 %v370
    %v410 = vunpack.c.l.b16 %v371
    %v411 = vpack.c.b16 %v396, %v395
    %v412 = vpack.c.b16 %v398, %v397
    %v413 = vpack.c.b16 %v400, %v399
    %v414 = vpack.c.b16 %v402, %v401
    %v415 = vpack.c.b16 %v404, %v403
    %v416 = vpack.c.b16 %v406, %v405
    %v417 = vpack.c.b16 %v408, %v407
    %v418 = vpack.c.b16 %v410, %v409
    %427 = vmatprep.subr.bf16.mxu0 0
    %428 = vmatpush1.bf16.msra.mxu0 %v418
    %429 = vmatprep.subr.bf16.mxu0 0
    %430 = vmatpush1.bf16.msra.mxu0 %v417
    %431 = vmatprep.subr.bf16.mxu0 0
    %432 = vmatpush1.bf16.msra.mxu0 %v416
    %433 = vmatprep.subr.bf16.mxu0 0
    %434 = vmatpush1.bf16.msra.mxu0 %v415
    %435 = vmatprep.subr.bf16.mxu0 0
    %436 = vmatpush1.bf16.msra.mxu0 %v414
    %437 = vmatprep.subr.bf16.mxu0 0
    %438 = vmatpush1.bf16.msra.mxu0 %v413
    %439 = vmatprep.subr.bf16.mxu0 0
    %440 = vmatpush1.bf16.msra.mxu0 %v412
    %441 = vmatprep.subr.bf16.mxu0 0
    %442 = vmatpush1.bf16.msra.mxu0 %v411
    %443 = vmatprep.subr.bf16.mxu0 0
    %444 = vmatpush2.bf16.msra.mxu0 0
    %445 = vmatprep.subr.bf16.mxu0 0
    %446 = vmatpush2.bf16.msra.mxu0 0
    %447 = vmatprep.subr.bf16.mxu0 0
    %448 = vmatpush2.bf16.msra.mxu0 0
    %449 = vmatprep.subr.bf16.mxu0 0
    %450 = vmatpush2.bf16.msra.mxu0 0
    %451 = vmatprep.subr.bf16.mxu0 0
    %452 = vmatpush2.bf16.msra.mxu0 0
    %453 = vmatprep.subr.bf16.mxu0 0
    %454 = vmatpush2.bf16.msra.mxu0 0
    %455 = vmatprep.subr.bf16.mxu0 0
    %456 = vmatpush2.bf16.msra.mxu0 0
    %457 = vmatprep.subr.bf16.mxu0 0
    %458 = vmatpush2.bf16.msra.mxu0 0
    %459 = vmatprep.mubr.bf16.mxu0 0
    %460 = vmatmul.mubr.bf16.gmra.mxu0 %v355
    %v461 = vpop.f32.mrf.mxu0
    %v462 = vadd.f32 %v377, %v461
    %v463 = vpop.f32.mrf.mxu0
    %v464 = vpop.f32.mrf.mxu0
    %v465 = vpop.f32.mrf.mxu0
    %466 = vdwg.mxu0
    %v467 = vmax.f32 %v462, 0.0
    %468 = vst [vmem:[#allocation4] sm:$0xff] %v467
    %v469 = vpack.c.bf16 %v467, %v467
    %v470 = vld [vmem:[%s5] sm:$0xf]
    %v471 = vld [vmem:[%s5 + $0x4] sm:$0xf]
    %v472 = vld [vmem:[%s5 + $0x8] sm:$0xf]
    %v473 = vld [vmem:[%s5 + $0xc] sm:$0xf]
    %v474 = vld [vmem:[%s5 + $0x10] sm:$0xf]
    %v475 = vld [vmem:[%s5 + $0x14] sm:$0xf]
    %v476 = vld [vmem:[%s5 + $0x18] sm:$0xf]
    %v477 = vld [vmem:[%s5 + $0x1c] sm:$0xf]
    %v478 = vld [vmem:[%s5 + $0x20] sm:$0xf]
    %v479 = vld [vmem:[%s5 + $0x24] sm:$0xf]
    %v480 = vld [vmem:[%s5 + $0x28] sm:$0xf]
    %v481 = vld [vmem:[%s5 + $0x2c] sm:$0xf]
    %v482 = vld [vmem:[%s5 + $0x30] sm:$0xf]
    %v483 = vld [vmem:[%s5 + $0x34] sm:$0xf]
    %v484 = vld [vmem:[%s5 + $0x38] sm:$0xf]
    %v485 = vld [vmem:[%s5 + $0x3c] sm:$0xf]
    %v486 = vld [vmem:[%s6] sm:$0x1]
    %v488 = vlaneseq
    %v489 = vshrl.u32 %v488, 7
    %v490 = vsub.s32 0, %v489
    %v491 = vrot.slane %v486, %v490
    %v509 = vunpack.c.l.b16 %v470
    %v510 = vunpack.c.l.b16 %v471
    %v511 = vunpack.c.l.b16 %v472
    %v512 = vunpack.c.l.b16 %v473
    %v513 = vunpack.c.l.b16 %v474
    %v514 = vunpack.c.l.b16 %v475
    %v515 = vunpack.c.l.b16 %v476
    %v516 = vunpack.c.l.b16 %v477
    %v517 = vunpack.c.l.b16 %v478
    %v518 = vunpack.c.l.b16 %v479
    %v519 = vunpack.c.l.b16 %v480
    %v520 = vunpack.c.l.b16 %v481
    %v521 = vunpack.c.l.b16 %v482
    %v522 = vunpack.c.l.b16 %v483
    %v523 = vunpack.c.l.b16 %v484
    %v524 = vunpack.c.l.b16 %v485
    %v525 = vpack.c.b16 %v510, %v509
    %v526 = vpack.c.b16 %v512, %v511
    %v527 = vpack.c.b16 %v514, %v513
    %v528 = vpack.c.b16 %v516, %v515
    %v529 = vpack.c.b16 %v518, %v517
    %v530 = vpack.c.b16 %v520, %v519
    %v531 = vpack.c.b16 %v522, %v521
    %v532 = vpack.c.b16 %v524, %v523
    %541 = vmatprep.subr.bf16.mxu0 0
    %542 = vmatpush1.bf16.msra.mxu0 %v532
    %543 = vmatprep.subr.bf16.mxu0 0
    %544 = vmatpush1.bf16.msra.mxu0 %v531
    %545 = vmatprep.subr.bf16.mxu0 0
    %546 = vmatpush1.bf16.msra.mxu0 %v530
    %547 = vmatprep.subr.bf16.mxu0 0
    %548 = vmatpush1.bf16.msra.mxu0 %v529
    %549 = vmatprep.subr.bf16.mxu0 0
    %550 = vmatpush1.bf16.msra.mxu0 %v528
    %551 = vmatprep.subr.bf16.mxu0 0
    %552 = vmatpush1.bf16.msra.mxu0 %v527
    %553 = vmatprep.subr.bf16.mxu0 0
    %554 = vmatpush1.bf16.msra.mxu0 %v526
    %555 = vmatprep.subr.bf16.mxu0 0
    %556 = vmatpush1.bf16.msra.mxu0 %v525
    %557 = vmatprep.subr.bf16.mxu0 0
    %558 = vmatpush2.bf16.msra.mxu0 0
    %559 = vmatprep.subr.bf16.mxu0 0
    %560 = vmatpush2.bf16.msra.mxu0 0
    %561 = vmatprep.subr.bf16.mxu0 0
    %562 = vmatpush2.bf16.msra.mxu0 0
    %563 = vmatprep.subr.bf16.mxu0 0
    %564 = vmatpush2.bf16.msra.mxu0 0
    %565 = vmatprep.subr.bf16.mxu0 0
    %566 = vmatpush2.bf16.msra.mxu0 0
    %567 = vmatprep.subr.bf16.mxu0 0
    %568 = vmatpush2.bf16.msra.mxu0 0
    %569 = vmatprep.subr.bf16.mxu0 0
    %570 = vmatpush2.bf16.msra.mxu0 0
    %571 = vmatprep.subr.bf16.mxu0 0
    %572 = vmatpush2.bf16.msra.mxu0 0
    %573 = vmatprep.mubr.bf16.mxu0 0
    %574 = vmatmul.mubr.bf16.gmra.mxu0 %v469
    %v575 = vpop.f32.mrf.mxu0
    %v576 = vadd.f32 %v491, %v575
    %v577 = vpop.f32.mrf.mxu0
    %v578 = vpop.f32.mrf.mxu0
    %v579 = vpop.f32.mrf.mxu0
    %580 = vdwg.mxu0
    %v581 = vmax.f32 %v576, 0.0
    %582 = vst [vmem:[#allocation6] sm:$0xff] %v581
    %v583 = vpack.c.bf16 %v581, %v581
    %v584 = vld [vmem:[%s7] sm:$0xf]
    %v585 = vld [vmem:[%s7 + $0x4] sm:$0xf]
    %v586 = vld [vmem:[%s7 + $0x8] sm:$0xf]
    %v587 = vld [vmem:[%s7 + $0xc] sm:$0xf]
    %v588 = vld [vmem:[%s7 + $0x10] sm:$0xf]
    %v589 = vld [vmem:[%s7 + $0x14] sm:$0xf]
    %v590 = vld [vmem:[%s7 + $0x18] sm:$0xf]
    %v591 = vld [vmem:[%s7 + $0x1c] sm:$0xf]
    %v592 = vld [vmem:[%s7 + $0x20] sm:$0xf]
    %v593 = vld [vmem:[%s7 + $0x24] sm:$0xf]
    %v594 = vld [vmem:[%s7 + $0x28] sm:$0xf]
    %v595 = vld [vmem:[%s7 + $0x2c] sm:$0xf]
    %v596 = vld [vmem:[%s7 + $0x30] sm:$0xf]
    %v597 = vld [vmem:[%s7 + $0x34] sm:$0xf]
    %v598 = vld [vmem:[%s7 + $0x38] sm:$0xf]
    %v599 = vld [vmem:[%s7 + $0x3c] sm:$0xf]
    %v600 = vld [vmem:[%s8] sm:$0x1]
    %v602 = vlaneseq
    %v603 = vshrl.u32 %v602, 7
    %v604 = vsub.s32 0, %v603
    %v605 = vrot.slane %v600, %v604
    %v623 = vunpack.c.l.b16 %v584
    %v624 = vunpack.c.l.b16 %v585
    %v625 = vunpack.c.l.b16 %v586
    %v626 = vunpack.c.l.b16 %v587
    %v627 = vunpack.c.l.b16 %v588
    %v628 = vunpack.c.l.b16 %v589
    %v629 = vunpack.c.l.b16 %v590
    %v630 = vunpack.c.l.b16 %v591
    %v631 = vunpack.c.l.b16 %v592
    %v632 = vunpack.c.l.b16 %v593
    %v633 = vunpack.c.l.b16 %v594
    %v634 = vunpack.c.l.b16 %v595
    %v635 = vunpack.c.l.b16 %v596
    %v636 = vunpack.c.l.b16 %v597
    %v637 = vunpack.c.l.b16 %v598
    %v638 = vunpack.c.l.b16 %v599
    %v639 = vpack.c.b16 %v624, %v623
    %v640 = vpack.c.b16 %v626, %v625
    %v641 = vpack.c.b16 %v628, %v627
    %v642 = vpack.c.b16 %v630, %v629
    %v643 = vpack.c.b16 %v632, %v631
    %v644 = vpack.c.b16 %v634, %v633
    %v645 = vpack.c.b16 %v636, %v635
    %v646 = vpack.c.b16 %v638, %v637
    %655 = vmatprep.subr.bf16.mxu0 0
    %656 = vmatpush1.bf16.msra.mxu0 %v646
    %657 = vmatprep.subr.bf16.mxu0 0
    %658 = vmatpush1.bf16.msra.mxu0 %v645
    %659 = vmatprep.subr.bf16.mxu0 0
    %660 = vmatpush1.bf16.msra.mxu0 %v644
    %661 = vmatprep.subr.bf16.mxu0 0
    %662 = vmatpush1.bf16.msra.mxu0 %v643
    %663 = vmatprep.subr.bf16.mxu0 0
    %664 = vmatpush1.bf16.msra.mxu0 %v642
    %665 = vmatprep.subr.bf16.mxu0 0
    %666 = vmatpush1.bf16.msra.mxu0 %v641
    %667 = vmatprep.subr.bf16.mxu0 0
    %668 = vmatpush1.bf16.msra.mxu0 %v640
    %669 = vmatprep.subr.bf16.mxu0 0
    %670 = vmatpush1.bf16.msra.mxu0 %v639
    %671 = vmatprep.subr.bf16.mxu0 0
    %672 = vmatpush2.bf16.msra.mxu0 0
    %673 = vmatprep.subr.bf16.mxu0 0
    %674 = vmatpush2.bf16.msra.mxu0 0
    %675 = vmatprep.subr.bf16.mxu0 0
    %676 = vmatpush2.bf16.msra.mxu0 0
    %677 = vmatprep.subr.bf16.mxu0 0
    %678 = vmatpush2.bf16.msra.mxu0 0
    %679 = vmatprep.subr.bf16.mxu0 0
    %680 = vmatpush2.bf16.msra.mxu0 0
    %681 = vmatprep.subr.bf16.mxu0 0
    %682 = vmatpush2.bf16.msra.mxu0 0
    %683 = vmatprep.subr.bf16.mxu0 0
    %684 = vmatpush2.bf16.msra.mxu0 0
    %685 = vmatprep.subr.bf16.mxu0 0
    %686 = vmatpush2.bf16.msra.mxu0 0
    %687 = vmatprep.mubr.bf16.mxu0 0
    %688 = vmatmul.mubr.bf16.gmra.mxu0 %v583
    %v689 = vpop.f32.mrf.mxu0
    %v690 = vadd.f32 %v605, %v689
    %v691 = vpop.f32.mrf.mxu0
    %v692 = vpop.f32.mrf.mxu0
    %v693 = vpop.f32.mrf.mxu0
    %694 = vdwg.mxu0
    %v695 = vmax.f32 %v690, 0.0
    %696 = vst [vmem:[#allocation7] sm:$0xff] %v695
    %v697 = vpack.c.bf16 %v695, %v695
    %v698 = vld [vmem:[%s9] sm:$0xf]
    %v699 = vld [vmem:[%s9 + $0x4] sm:$0xf]
    %v700 = vld [vmem:[%s9 + $0x8] sm:$0xf]
    %v701 = vld [vmem:[%s9 + $0xc] sm:$0xf]
    %v702 = vld [vmem:[%s9 + $0x10] sm:$0xf]
    %v703 = vld [vmem:[%s9 + $0x14] sm:$0xf]
    %v704 = vld [vmem:[%s9 + $0x18] sm:$0xf]
    %v705 = vld [vmem:[%s9 + $0x1c] sm:$0xf]
    %v706 = vld [vmem:[%s9 + $0x20] sm:$0xf]
    %v707 = vld [vmem:[%s9 + $0x24] sm:$0xf]
    %v708 = vld [vmem:[%s9 + $0x28] sm:$0xf]
    %v709 = vld [vmem:[%s9 + $0x2c] sm:$0xf]
    %v710 = vld [vmem:[%s9 + $0x30] sm:$0xf]
    %v711 = vld [vmem:[%s9 + $0x34] sm:$0xf]
    %v712 = vld [vmem:[%s9 + $0x38] sm:$0xf]
    %v713 = vld [vmem:[%s9 + $0x3c] sm:$0xf]
    %v714 = vld [vmem:[%s10] sm:$0x1]
    %v716 = vlaneseq
    %v717 = vshrl.u32 %v716, 7
    %v718 = vsub.s32 0, %v717
    %v719 = vrot.slane %v714, %v718
    %v737 = vunpack.c.l.b16 %v698
    %v738 = vunpack.c.l.b16 %v699
    %v739 = vunpack.c.l.b16 %v700
    %v740 = vunpack.c.l.b16 %v701
    %v741 = vunpack.c.l.b16 %v702
    %v742 = vunpack.c.l.b16 %v703
    %v743 = vunpack.c.l.b16 %v704
    %v744 = vunpack.c.l.b16 %v705
    %v745 = vunpack.c.l.b16 %v706
    %v746 = vunpack.c.l.b16 %v707
    %v747 = vunpack.c.l.b16 %v708
    %v748 = vunpack.c.l.b16 %v709
    %v749 = vunpack.c.l.b16 %v710
    %v750 = vunpack.c.l.b16 %v711
    %v751 = vunpack.c.l.b16 %v712
    %v752 = vunpack.c.l.b16 %v713
    %v753 = vpack.c.b16 %v738, %v737
    %v754 = vpack.c.b16 %v740, %v739
    %v755 = vpack.c.b16 %v742, %v741
    %v756 = vpack.c.b16 %v744, %v743
    %v757 = vpack.c.b16 %v746, %v745
    %v758 = vpack.c.b16 %v748, %v747
    %v759 = vpack.c.b16 %v750, %v749
    %v760 = vpack.c.b16 %v752, %v751
    %769 = vmatprep.subr.bf16.mxu0 0
    %770 = vmatpush1.bf16.msra.mxu0 %v760
    %771 = vmatprep.subr.bf16.mxu0 0
    %772 = vmatpush1.bf16.msra.mxu0 %v759
    %773 = vmatprep.subr.bf16.mxu0 0
    %774 = vmatpush1.bf16.msra.mxu0 %v758
    %775 = vmatprep.subr.bf16.mxu0 0
    %776 = vmatpush1.bf16.msra.mxu0 %v757
    %777 = vmatprep.subr.bf16.mxu0 0
    %778 = vmatpush1.bf16.msra.mxu0 %v756
    %779 = vmatprep.subr.bf16.mxu0 0
    %780 = vmatpush1.bf16.msra.mxu0 %v755
    %781 = vmatprep.subr.bf16.mxu0 0
    %782 = vmatpush1.bf16.msra.mxu0 %v754
    %783 = vmatprep.subr.bf16.mxu0 0
    %784 = vmatpush1.bf16.msra.mxu0 %v753
    %785 = vmatprep.subr.bf16.mxu0 0
    %786 = vmatpush2.bf16.msra.mxu0 0
    %787 = vmatprep.subr.bf16.mxu0 0
    %788 = vmatpush2.bf16.msra.mxu0 0
    %789 = vmatprep.subr.bf16.mxu0 0
    %790 = vmatpush2.bf16.msra.mxu0 0
    %791 = vmatprep.subr.bf16.mxu0 0
    %792 = vmatpush2.bf16.msra.mxu0 0
    %793 = vmatprep.subr.bf16.mxu0 0
    %794 = vmatpush2.bf16.msra.mxu0 0
    %795 = vmatprep.subr.bf16.mxu0 0
    %796 = vmatpush2.bf16.msra.mxu0 0
    %797 = vmatprep.subr.bf16.mxu0 0
    %798 = vmatpush2.bf16.msra.mxu0 0
    %799 = vmatprep.subr.bf16.mxu0 0
    %800 = vmatpush2.bf16.msra.mxu0 0
    %801 = vmatprep.mubr.bf16.mxu0 0
    %802 = vmatmul.mubr.bf16.gmra.mxu0 %v697
    %v803 = vpop.f32.mrf.mxu0
    %v804 = vadd.f32 %v719, %v803
    %v805 = vpop.f32.mrf.mxu0
    %v806 = vpop.f32.mrf.mxu0
    %v807 = vpop.f32.mrf.mxu0
    %808 = vdwg.mxu0
    %809 = vst [vmem:[%s21] sm:$0xff] %v804
    %v810 = vld [vmem:[%s11] sm:$0xf]
    %v811 = vld [vmem:[%s11 + $0x4] sm:$0xf]
    %v812 = vld [vmem:[%s11 + $0x8] sm:$0xf]
    %v813 = vld [vmem:[%s11 + $0xc] sm:$0xf]
    %v814 = vld [vmem:[%s11 + $0x10] sm:$0xf]
    %v815 = vld [vmem:[%s11 + $0x14] sm:$0xf]
    %v816 = vld [vmem:[%s11 + $0x18] sm:$0xf]
    %v817 = vld [vmem:[%s11 + $0x1c] sm:$0xf]
    %v818 = vld [vmem:[%s11 + $0x20] sm:$0xf]
    %v819 = vld [vmem:[%s11 + $0x24] sm:$0xf]
    %v820 = vld [vmem:[%s11 + $0x28] sm:$0xf]
    %v821 = vld [vmem:[%s11 + $0x2c] sm:$0xf]
    %v822 = vld [vmem:[%s11 + $0x30] sm:$0xf]
    %v823 = vld [vmem:[%s11 + $0x34] sm:$0xf]
    %v824 = vld [vmem:[%s11 + $0x38] sm:$0xf]
    %v825 = vld [vmem:[%s11 + $0x3c] sm:$0xf]
    %v826 = vld [vmem:[%s12] sm:$0x1]
    %v828 = vlaneseq
    %v829 = vshrl.u32 %v828, 7
    %v830 = vsub.s32 0, %v829
    %v831 = vrot.slane %v826, %v830
    %v849 = vunpack.c.l.b16 %v810
    %v850 = vunpack.c.l.b16 %v811
    %v851 = vunpack.c.l.b16 %v812
    %v852 = vunpack.c.l.b16 %v813
    %v853 = vunpack.c.l.b16 %v814
    %v854 = vunpack.c.l.b16 %v815
    %v855 = vunpack.c.l.b16 %v816
    %v856 = vunpack.c.l.b16 %v817
    %v857 = vunpack.c.l.b16 %v818
    %v858 = vunpack.c.l.b16 %v819
    %v859 = vunpack.c.l.b16 %v820
    %v860 = vunpack.c.l.b16 %v821
    %v861 = vunpack.c.l.b16 %v822
    %v862 = vunpack.c.l.b16 %v823
    %v863 = vunpack.c.l.b16 %v824
    %v864 = vunpack.c.l.b16 %v825
    %v865 = vpack.c.b16 %v850, %v849
    %v866 = vpack.c.b16 %v852, %v851
    %v867 = vpack.c.b16 %v854, %v853
    %v868 = vpack.c.b16 %v856, %v855
    %v869 = vpack.c.b16 %v858, %v857
    %v870 = vpack.c.b16 %v860, %v859
    %v871 = vpack.c.b16 %v862, %v861
    %v872 = vpack.c.b16 %v864, %v863
    %881 = vmatprep.subr.bf16.mxu0 0
    %882 = vmatpush1.bf16.msra.mxu0 %v872
    %883 = vmatprep.subr.bf16.mxu0 0
    %884 = vmatpush1.bf16.msra.mxu0 %v871
    %885 = vmatprep.subr.bf16.mxu0 0
    %886 = vmatpush1.bf16.msra.mxu0 %v870
    %887 = vmatprep.subr.bf16.mxu0 0
    %888 = vmatpush1.bf16.msra.mxu0 %v869
    %889 = vmatprep.subr.bf16.mxu0 0
    %890 = vmatpush1.bf16.msra.mxu0 %v868
    %891 = vmatprep.subr.bf16.mxu0 0
    %892 = vmatpush1.bf16.msra.mxu0 %v867
    %893 = vmatprep.subr.bf16.mxu0 0
    %894 = vmatpush1.bf16.msra.mxu0 %v866
    %895 = vmatprep.subr.bf16.mxu0 0
    %896 = vmatpush1.bf16.msra.mxu0 %v865
    %897 = vmatprep.subr.bf16.mxu0 0
    %898 = vmatpush2.bf16.msra.mxu0 0
    %899 = vmatprep.subr.bf16.mxu0 0
    %900 = vmatpush2.bf16.msra.mxu0 0
    %901 = vmatprep.subr.bf16.mxu0 0
    %902 = vmatpush2.bf16.msra.mxu0 0
    %903 = vmatprep.subr.bf16.mxu0 0
    %904 = vmatpush2.bf16.msra.mxu0 0
    %905 = vmatprep.subr.bf16.mxu0 0
    %906 = vmatpush2.bf16.msra.mxu0 0
    %907 = vmatprep.subr.bf16.mxu0 0
    %908 = vmatpush2.bf16.msra.mxu0 0
    %909 = vmatprep.subr.bf16.mxu0 0
    %910 = vmatpush2.bf16.msra.mxu0 0
    %911 = vmatprep.subr.bf16.mxu0 0
    %912 = vmatpush2.bf16.msra.mxu0 0
    %913 = vmatprep.mubr.bf16.mxu0 0
    %914 = vmatmul.mubr.bf16.gmra.mxu0 %v469
    %v915 = vpop.f32.mrf.mxu0
    %v916 = vadd.f32 %v831, %v915
    %v917 = vpop.f32.mrf.mxu0
    %v918 = vpop.f32.mrf.mxu0
    %v919 = vpop.f32.mrf.mxu0
    %920 = vdwg.mxu0
    %v921 = vmax.f32 %v916, 0.0
    %922 = vst [vmem:[%s22] sm:$0xff] %v921
    %v923 = vpack.c.bf16 %v921, %v921
    %v924 = vld [vmem:[%s13] sm:$0xf]
    %v925 = vld [vmem:[%s13 + $0x4] sm:$0xf]
    %v926 = vld [vmem:[%s13 + $0x8] sm:$0xf]
    %v927 = vld [vmem:[%s13 + $0xc] sm:$0xf]
    %v928 = vld [vmem:[%s13 + $0x10] sm:$0xf]
    %v929 = vld [vmem:[%s13 + $0x14] sm:$0xf]
    %v930 = vld [vmem:[%s13 + $0x18] sm:$0xf]
    %v931 = vld [vmem:[%s13 + $0x1c] sm:$0xf]
    %v932 = vld [vmem:[%s13 + $0x20] sm:$0xf]
    %v933 = vld [vmem:[%s13 + $0x24] sm:$0xf]
    %v934 = vld [vmem:[%s13 + $0x28] sm:$0xf]
    %v935 = vld [vmem:[%s13 + $0x2c] sm:$0xf]
    %v936 = vld [vmem:[%s13 + $0x30] sm:$0xf]
    %v937 = vld [vmem:[%s13 + $0x34] sm:$0xf]
    %v938 = vld [vmem:[%s13 + $0x38] sm:$0xf]
    %v939 = vld [vmem:[%s13 + $0x3c] sm:$0xf]
    %v940 = vld [vmem:[%s14] sm:$0x1]
    %v942 = vlaneseq
    %v943 = vshrl.u32 %v942, 7
    %v944 = vsub.s32 0, %v943
    %v945 = vrot.slane %v940, %v944
    %v963 = vunpack.c.l.b16 %v924
    %v964 = vunpack.c.l.b16 %v925
    %v965 = vunpack.c.l.b16 %v926
    %v966 = vunpack.c.l.b16 %v927
    %v967 = vunpack.c.l.b16 %v928
    %v968 = vunpack.c.l.b16 %v929
    %v969 = vunpack.c.l.b16 %v930
    %v970 = vunpack.c.l.b16 %v931
    %v971 = vunpack.c.l.b16 %v932
    %v972 = vunpack.c.l.b16 %v933
    %v973 = vunpack.c.l.b16 %v934
    %v974 = vunpack.c.l.b16 %v935
    %v975 = vunpack.c.l.b16 %v936
    %v976 = vunpack.c.l.b16 %v937
    %v977 = vunpack.c.l.b16 %v938
    %v978 = vunpack.c.l.b16 %v939
    %v979 = vpack.c.b16 %v964, %v963
    %v980 = vpack.c.b16 %v966, %v965
    %v981 = vpack.c.b16 %v968, %v967
    %v982 = vpack.c.b16 %v970, %v969
    %v983 = vpack.c.b16 %v972, %v971
    %v984 = vpack.c.b16 %v974, %v973
    %v985 = vpack.c.b16 %v976, %v975
    %v986 = vpack.c.b16 %v978, %v977
    %995 = vmatprep.subr.bf16.mxu0 0
    %996 = vmatpush1.bf16.msra.mxu0 %v986
    %997 = vmatprep.subr.bf16.mxu0 0
    %998 = vmatpush1.bf16.msra.mxu0 %v985
    %999 = vmatprep.subr.bf16.mxu0 0
    %1000 = vmatpush1.bf16.msra.mxu0 %v984
    %1001 = vmatprep.subr.bf16.mxu0 0
    %1002 = vmatpush1.bf16.msra.mxu0 %v983
    %1003 = vmatprep.subr.bf16.mxu0 0
    %1004 = vmatpush1.bf16.msra.mxu0 %v982
    %1005 = vmatprep.subr.bf16.mxu0 0
    %1006 = vmatpush1.bf16.msra.mxu0 %v981
    %1007 = vmatprep.subr.bf16.mxu0 0
    %1008 = vmatpush1.bf16.msra.mxu0 %v980
    %1009 = vmatprep.subr.bf16.mxu0 0
    %1010 = vmatpush1.bf16.msra.mxu0 %v979
    %1011 = vmatprep.subr.bf16.mxu0 0
    %1012 = vmatpush2.bf16.msra.mxu0 0
    %1013 = vmatprep.subr.bf16.mxu0 0
    %1014 = vmatpush2.bf16.msra.mxu0 0
    %1015 = vmatprep.subr.bf16.mxu0 0
    %1016 = vmatpush2.bf16.msra.mxu0 0
    %1017 = vmatprep.subr.bf16.mxu0 0
    %1018 = vmatpush2.bf16.msra.mxu0 0
    %1019 = vmatprep.subr.bf16.mxu0 0
    %1020 = vmatpush2.bf16.msra.mxu0 0
    %1021 = vmatprep.subr.bf16.mxu0 0
    %1022 = vmatpush2.bf16.msra.mxu0 0
    %1023 = vmatprep.subr.bf16.mxu0 0
    %1024 = vmatpush2.bf16.msra.mxu0 0
    %1025 = vmatprep.subr.bf16.mxu0 0
    %1026 = vmatpush2.bf16.msra.mxu0 0
    %1027 = vmatprep.mubr.bf16.mxu0 0
    %1028 = vmatmul.mubr.bf16.gmra.mxu0 %v923
    %v1029 = vpop.f32.mrf.mxu0
    %v1030 = vadd.f32 %v945, %v1029
    %v1031 = vpop.f32.mrf.mxu0
    %v1032 = vpop.f32.mrf.mxu0
    %v1033 = vpop.f32.mrf.mxu0
    %1034 = vdwg.mxu0
    %v1035 = vmax.f32 %v1030, 0.0
    %1036 = vst [vmem:[%s23] sm:$0xff] %v1035
    %v1037 = vpack.c.bf16 %v1035, %v1035
    %v1038 = vld [vmem:[%s15] sm:$0xf]
    %v1039 = vld [vmem:[%s15 + $0x4] sm:$0xf]
    %v1040 = vld [vmem:[%s15 + $0x8] sm:$0xf]
    %v1041 = vld [vmem:[%s15 + $0xc] sm:$0xf]
    %v1042 = vld [vmem:[%s15 + $0x10] sm:$0xf]
    %v1043 = vld [vmem:[%s15 + $0x14] sm:$0xf]
    %v1044 = vld [vmem:[%s15 + $0x18] sm:$0xf]
    %v1045 = vld [vmem:[%s15 + $0x1c] sm:$0xf]
    %v1046 = vld [vmem:[%s15 + $0x20] sm:$0xf]
    %v1047 = vld [vmem:[%s15 + $0x24] sm:$0xf]
    %v1048 = vld [vmem:[%s15 + $0x28] sm:$0xf]
    %v1049 = vld [vmem:[%s15 + $0x2c] sm:$0xf]
    %v1050 = vld [vmem:[%s15 + $0x30] sm:$0xf]
    %v1051 = vld [vmem:[%s15 + $0x34] sm:$0xf]
    %v1052 = vld [vmem:[%s15 + $0x38] sm:$0xf]
    %v1053 = vld [vmem:[%s15 + $0x3c] sm:$0xf]
    %v1054 = vld [vmem:[%s16] sm:$0x1]
    %v1056 = vlaneseq
    %v1057 = vshrl.u32 %v1056, 7
    %v1058 = vsub.s32 0, %v1057
    %v1059 = vrot.slane %v1054, %v1058
    %v1077 = vunpack.c.l.b16 %v1038
    %v1078 = vunpack.c.l.b16 %v1039
    %v1079 = vunpack.c.l.b16 %v1040
    %v1080 = vunpack.c.l.b16 %v1041
    %v1081 = vunpack.c.l.b16 %v1042
    %v1082 = vunpack.c.l.b16 %v1043
    %v1083 = vunpack.c.l.b16 %v1044
    %v1084 = vunpack.c.l.b16 %v1045
    %v1085 = vunpack.c.l.b16 %v1046
    %v1086 = vunpack.c.l.b16 %v1047
    %v1087 = vunpack.c.l.b16 %v1048
    %v1088 = vunpack.c.l.b16 %v1049
    %v1089 = vunpack.c.l.b16 %v1050
    %v1090 = vunpack.c.l.b16 %v1051
    %v1091 = vunpack.c.l.b16 %v1052
    %v1092 = vunpack.c.l.b16 %v1053
    %v1093 = vpack.c.b16 %v1078, %v1077
    %v1094 = vpack.c.b16 %v1080, %v1079
    %v1095 = vpack.c.b16 %v1082, %v1081
    %v1096 = vpack.c.b16 %v1084, %v1083
    %v1097 = vpack.c.b16 %v1086, %v1085
    %v1098 = vpack.c.b16 %v1088, %v1087
    %v1099 = vpack.c.b16 %v1090, %v1089
    %v1100 = vpack.c.b16 %v1092, %v1091
    %1109 = vmatprep.subr.bf16.mxu0 0
    %1110 = vmatpush1.bf16.msra.mxu0 %v1100
    %1111 = vmatprep.subr.bf16.mxu0 0
    %1112 = vmatpush1.bf16.msra.mxu0 %v1099
    %1113 = vmatprep.subr.bf16.mxu0 0
    %1114 = vmatpush1.bf16.msra.mxu0 %v1098
    %1115 = vmatprep.subr.bf16.mxu0 0
    %1116 = vmatpush1.bf16.msra.mxu0 %v1097
    %1117 = vmatprep.subr.bf16.mxu0 0
    %1118 = vmatpush1.bf16.msra.mxu0 %v1096
    %1119 = vmatprep.subr.bf16.mxu0 0
    %1120 = vmatpush1.bf16.msra.mxu0 %v1095
    %1121 = vmatprep.subr.bf16.mxu0 0
    %1122 = vmatpush1.bf16.msra.mxu0 %v1094
    %1123 = vmatprep.subr.bf16.mxu0 0
    %1124 = vmatpush1.bf16.msra.mxu0 %v1093
    %1125 = vmatprep.subr.bf16.mxu0 0
    %1126 = vmatpush2.bf16.msra.mxu0 0
    %1127 = vmatprep.subr.bf16.mxu0 0
    %1128 = vmatpush2.bf16.msra.mxu0 0
    %1129 = vmatprep.subr.bf16.mxu0 0
    %1130 = vmatpush2.bf16.msra.mxu0 0
    %1131 = vmatprep.subr.bf16.mxu0 0
    %1132 = vmatpush2.bf16.msra.mxu0 0
    %1133 = vmatprep.subr.bf16.mxu0 0
    %1134 = vmatpush2.bf16.msra.mxu0 0
    %1135 = vmatprep.subr.bf16.mxu0 0
    %1136 = vmatpush2.bf16.msra.mxu0 0
    %1137 = vmatprep.subr.bf16.mxu0 0
    %1138 = vmatpush2.bf16.msra.mxu0 0
    %1139 = vmatprep.subr.bf16.mxu0 0
    %1140 = vmatpush2.bf16.msra.mxu0 0
    %1141 = vmatprep.mubr.bf16.mxu0 0
    %1142 = vmatmul.mubr.bf16.gmra.mxu0 %v1037
    %v1143 = vpop.f32.mrf.mxu0
    %v1144 = vadd.f32 %v1059, %v1143
    %v1145 = vpop.f32.mrf.mxu0
    %v1146 = vpop.f32.mrf.mxu0
    %v1147 = vpop.f32.mrf.mxu0
    %1148 = vdwg.mxu0
    %1149 = vst [vmem:[%s24] sm:$0xff] %v1144
    // Predicated region
    $region70: #{mlp_reg_fpad_forward.1} parent=1 // pred_check
      _
    $region71: #{mlp_reg_fpad_forward.1} parent=1 // pred_check_branch
      %1151 = sbr.rel (0) target = $region73
    $region72: #{mlp_reg_fpad_forward.1} parent=1 // pred_region
      %s1153 = ssub.s32 128, 128
      %1154 = vsyncadd [#allocation3], %s1153
      %s1156 = sshll.u32 [#allocation2], 4
      %s1157 = int_to_ptr.vmem [resolvable:$true] %s1156
      %1159 = dma.vmem_to_hbm [thread:$0]  %s1157, 128, %s17, [#allocation3]
    $region73: #{mlp_reg_fpad_forward.1} parent=1 // pred_fallthru
      _
    // Predicated region
    $region74: #{mlp_reg_fpad_forward.1} parent=1 // pred_check
      _
    $region75: #{mlp_reg_fpad_forward.1} parent=1 // pred_check_branch
      %1161 = sbr.rel (0) target = $region77
    $region76: #{mlp_reg_fpad_forward.1} parent=1 // pred_region
      %s1163 = ssub.s32 128, 128
      %1164 = vsyncadd [#allocation5], %s1163
      %s1166 = sshll.u32 [#allocation4], 4
      %s1167 = int_to_ptr.vmem [resolvable:$true] %s1166
      %1169 = dma.vmem_to_hbm [thread:$0]  %s1167, 128, %s18, [#allocation5]
    $region77: #{mlp_reg_fpad_forward.1} parent=1 // pred_fallthru
      _
    // Predicated region
    $region78: #{mlp_reg_fpad_forward.1} parent=1 // pred_check
      _
    $region79: #{mlp_reg_fpad_forward.1} parent=1 // pred_check_branch
      %1171 = sbr.rel (0) target = $region81
    $region80: #{mlp_reg_fpad_forward.1} parent=1 // pred_region
      %s1173 = ssub.s32 128, 128
      %1174 = vsyncadd [#allocation5], %s1173
      %s1176 = sshll.u32 [#allocation6], 4
      %s1177 = int_to_ptr.vmem [resolvable:$true] %s1176
      %1179 = dma.vmem_to_hbm [thread:$0]  %s1177, 128, %s19, [#allocation5]
    $region81: #{mlp_reg_fpad_forward.1} parent=1 // pred_fallthru
      _
    // Predicated region
    $region82: #{mlp_reg_fpad_forward.1} parent=1 // pred_check
      _
    $region83: #{mlp_reg_fpad_forward.1} parent=1 // pred_check_branch
      %1181 = sbr.rel (0) target = $region85
    $region84: #{mlp_reg_fpad_forward.1} parent=1 // pred_region
      %s1183 = ssub.s32 128, 128
      %1184 = vsyncadd [#allocation8], %s1183
      %s1186 = sshll.u32 [#allocation7], 4
      %s1187 = int_to_ptr.vmem [resolvable:$true] %s1186
      %1189 = dma.vmem_to_hbm [thread:$0]  %s1187, 128, %s20, [#allocation8]
    $region85: #{mlp_reg_fpad_forward.1} parent=1 // pred_fallthru
      _
    // Predicated region
    $region86: #{mlp_reg_fpad_forward.1} parent=1 // pred_check
      _
    $region87: #{mlp_reg_fpad_forward.1} parent=1 // pred_check_branch
      %1191 = sbr.rel (0) target = $region89
    $region88: #{mlp_reg_fpad_forward.1} parent=1 // pred_region
      _
    $region89: #{mlp_reg_fpad_forward.1} parent=1 // pred_fallthru
      _
    // Predicated region
    $region90: #{mlp_reg_fpad_forward.1} parent=1 // pred_check
      _
    $region91: #{mlp_reg_fpad_forward.1} parent=1 // pred_check_branch
      %1193 = sbr.rel (0) target = $region93
    $region92: #{mlp_reg_fpad_forward.1} parent=1 // pred_region
      _
    $region93: #{mlp_reg_fpad_forward.1} parent=1 // pred_fallthru
      _
    // Predicated region
    $region94: #{mlp_reg_fpad_forward.1} parent=1 // pred_check
      _
    $region95: #{mlp_reg_fpad_forward.1} parent=1 // pred_check_branch
      %1195 = sbr.rel (0) target = $region97
    $region96: #{mlp_reg_fpad_forward.1} parent=1 // pred_region
      _
    $region97: #{mlp_reg_fpad_forward.1} parent=1 // pred_fallthru
      _
    // Predicated region
    $region98: #{mlp_reg_fpad_forward.1} parent=1 // pred_check
      _
    $region99: #{mlp_reg_fpad_forward.1} parent=1 // pred_check_branch
      %1197 = sbr.rel (0) target = $region101
    $region100: #{mlp_reg_fpad_forward.1} parent=1 // pred_region
      _
    $region101: #{mlp_reg_fpad_forward.1} parent=1 // pred_fallthru
      _
    // Predicated region
    $region102: #{mlp_reg_fpad_forward.1} parent=1 // pred_check
      _
    $region103: #{mlp_reg_fpad_forward.1} parent=1 // pred_check_branch
      %1199 = sbr.rel (0) target = $region105
    $region104: #{mlp_reg_fpad_forward.1} parent=1 // pred_region
      %1200 = dma.done [#allocation3], 128
    $region105: #{mlp_reg_fpad_forward.1} parent=1 // pred_fallthru
      _
    // Predicated region
    $region106: #{mlp_reg_fpad_forward.1} parent=1 // pred_check
      _
    $region107: #{mlp_reg_fpad_forward.1} parent=1 // pred_check_branch
      %1202 = sbr.rel (0) target = $region109
    $region108: #{mlp_reg_fpad_forward.1} parent=1 // pred_region
      %1203 = dma.done [#allocation5], 128
    $region109: #{mlp_reg_fpad_forward.1} parent=1 // pred_fallthru
      _
    // Predicated region
    $region110: #{mlp_reg_fpad_forward.1} parent=1 // pred_check
      _
    $region111: #{mlp_reg_fpad_forward.1} parent=1 // pred_check_branch
      %1205 = sbr.rel (0) target = $region113
    $region112: #{mlp_reg_fpad_forward.1} parent=1 // pred_region
      %1206 = dma.done [#allocation5], 128
    $region113: #{mlp_reg_fpad_forward.1} parent=1 // pred_fallthru
      _
    // Predicated region
    $region114: #{mlp_reg_fpad_forward.1} parent=1 // pred_check
      _
    $region115: #{mlp_reg_fpad_forward.1} parent=1 // pred_check_branch
      %1208 = sbr.rel (0) target = $region117
    $region116: #{mlp_reg_fpad_forward.1} parent=1 // pred_region
      %1209 = dma.done [#allocation8], 128
    $region117: #{mlp_reg_fpad_forward.1} parent=1 // pred_fallthru
      _
    // Predicated region
    $region118: #{mlp_reg_fpad_forward.1} parent=1 // pred_check
      _
    $region119: #{mlp_reg_fpad_forward.1} parent=1 // pred_check_branch
      %1211 = sbr.rel (0) target = $region121
    $region120: #{mlp_reg_fpad_forward.1} parent=1 // pred_region
      _
    $region121: #{mlp_reg_fpad_forward.1} parent=1 // pred_fallthru
      _
    // Predicated region
    $region122: #{mlp_reg_fpad_forward.1} parent=1 // pred_check
      _
    $region123: #{mlp_reg_fpad_forward.1} parent=1 // pred_check_branch
      %1213 = sbr.rel (0) target = $region125
    $region124: #{mlp_reg_fpad_forward.1} parent=1 // pred_region
      _
    $region125: #{mlp_reg_fpad_forward.1} parent=1 // pred_fallthru
      _
    // Predicated region
    $region126: #{mlp_reg_fpad_forward.1} parent=1 // pred_check
      _
    $region127: #{mlp_reg_fpad_forward.1} parent=1 // pred_check_branch
      %1215 = sbr.rel (0) target = $region129
    $region128: #{mlp_reg_fpad_forward.1} parent=1 // pred_region
      _
    $region129: #{mlp_reg_fpad_forward.1} parent=1 // pred_fallthru
      _
    // Predicated region
    $region130: #{mlp_reg_fpad_forward.1} parent=1 // pred_check
      _
    $region131: #{mlp_reg_fpad_forward.1} parent=1 // pred_check_branch
      %1217 = sbr.rel (0) target = $region133
    $region132: #{mlp_reg_fpad_forward.1} parent=1 // pred_region
      _
    $region133: #{mlp_reg_fpad_forward.1} parent=1 // pred_fallthru
      _
    %1218 = vsyncpa [#allocation3], 1
    %1219 = vsyncpa [#allocation5], 1
    %1220 = vsyncpa [#allocation8], 1

</llo_original>
